<compile_context>
chip_gen: v7x
topology: tpu7x:2x2x1
jax: 0.10.0
libtpu: 0.0.40
codegen_flags: <defaults>
</compile_context>

<pallas_src>
import functools

import jax
import jax.numpy as jnp
from jax.experimental import pallas as pl
from jax.experimental.pallas import tpu as pltpu


def _round_up(x, m):
    return ((x + m - 1) // m) * m


# ----------------------------------------------------------------------------
# Fused Pallas kernel: conv-as-GEMM + BN + ReLU + GAP + ridge head
# ----------------------------------------------------------------------------
def fused_stem_gap_ridge_kernel(patch_ref, w_ref, scale_ref, shift_ref,
                                rw_ref, rb_ref, out_ref, acc_ref,
                                *, inv_hw, hw, needs_mask):
    """One (image, HW-tile) grid step.

    patch_ref : (1, TILE_HW, K)      bf16 im2col patches for this tile (K=147)
    w_ref     : (K, Cpad)            bf16 conv weight (GEMM layout), resident
    scale_ref : (1, Cpad)            f32 folded-BN scale (zero in padding)
    shift_ref : (1, Cpad)            f32 folded-BN shift (zero in padding)
    rw_ref    : (Cpad, Dpad)         f32 ridge weight  (zero padded rows/cols)
    rb_ref    : (1, Dpad)            f32 ridge bias    (zero in padding)
    out_ref   : (1, 8, Dpad)         f32 output block for this image
    acc_ref   : (1, Cpad)            f32 VMEM scratch: running GAP sum
    """
    t = pl.program_id(1)

    @pl.when(t == 0)
    def _init():
        acc_ref[...] = jnp.zeros_like(acc_ref)

    # Conv as GEMM on the MXU: bf16 inputs, f32 accumulation.
    y = jnp.dot(patch_ref[0], w_ref[...], preferred_element_type=jnp.float32)
    # Folded BatchNorm + ReLU epilogue in f32 (VPU work, hides under the DMA).
    y = jnp.maximum(y * scale_ref[...] + shift_ref[...], 0.0)

    if needs_mask:
        # cdiv-tiled HW: zero the padded tail rows so they cannot leak into
        # the global-average pool (pad rows would otherwise contribute
        # relu(shift) != 0).  Static no-op when HW divides evenly.
        tile_hw = y.shape[0]
        row = jax.lax.broadcasted_iota(jnp.int32, (tile_hw, 1), 0)
        y = jnp.where(t * tile_hw + row < hw, y, 0.0)

    # Partial global-average-pool: per-channel column sums on the XLU
    # (sublane reduce).  The XLU is otherwise idle here; the MXU stays free
    # for the conv GEMM.  (Review #6: no per-step ones-row HIGHEST matmul.)
    acc_ref[...] += jnp.sum(y, axis=0, keepdims=True)

    @pl.when(t == pl.num_programs(1) - 1)
    def _finalize():
        pooled = acc_ref[...] * inv_hw                        # (1, Cpad)
        # Runs once per image; HIGHEST here is negligible and keeps the ridge
        # head numerically close to an f32 reference.
        z = jnp.dot(pooled, rw_ref[...],
                    preferred_element_type=jnp.float32,
                    precision=jax.lax.Precision.HIGHEST) + rb_ref[...]
        # Broadcast across 8 sublanes so the output block is (8, 128)-aligned.
        out_ref[...] = jnp.broadcast_to(z[:, None, :], out_ref.shape)


def _pick_tile_hw(hw, max_tile=2048):
    """HW tile: prefer an exact divisor that is a multiple of 16 (bf16 packs
    2 rows/sublane), up to max_tile; otherwise use cdiv tiling (the kernel
    masks the padded tail rows)."""
    best = None
    for t in range(16, min(hw, max_tile) + 1, 16):
        if hw % t == 0:
            best = t
    if best is not None:
        return best
    if hw <= max_tile:
        return _round_up(hw, 16)          # one padded + masked tile
    return max_tile                        # cdiv tiles, masked tail tile


def _vmem_limit_bytes(tile_hw, kfeat, cpad, dpad):
    """Footprint-derived VMEM cap (review #5): actual padded tile bytes with
    double-buffering, plus headroom, clamped to [16, 48] MiB — well under
    v7x's 64 MiB physical VMEM."""
    lane = lambda n: _round_up(n, 128)
    patch = 2 * tile_hw * lane(kfeat) * 2                 # bf16, double-buffered
    weight = 2 * _round_up(kfeat, 16) * lane(cpad) * 2    # bf16 resident
    smalls = 2 * 4 * 8 * (lane(cpad) + lane(dpad)) * 4    # scale/shift/bias/acc
    ridge = 2 * _round_up(cpad, 8) * lane(dpad) * 4
    outb = 2 * 8 * lane(dpad) * 4
    y_tmp = tile_hw * lane(cpad) * 4                      # f32 GEMM intermediate
    total = patch + weight + smalls + ridge + outb + y_tmp
    return int(min(max(2 * total + (4 << 20), 16 << 20), 48 << 20))


def _preferred_dim_semantics():
    """v7x has 2 TensorCores per chip: plain 'parallel' does not engage the
    second one, CORE_PARALLEL does (review #4).  v5e/v6e (1 TC) keep PARALLEL.
    A call-time fallback in _fused_forward guards against lowering issues."""
    try:
        kind = jax.devices()[0].device_kind.lower()
    except Exception:
        kind = ""
    if "v7" in kind or "7x" in kind:
        return (pltpu.CORE_PARALLEL, pltpu.ARBITRARY)
    return (pltpu.PARALLEL, pltpu.ARBITRARY)


def _fused_forward(patches_bf16, w_bf16, scale, shift, rw, rb, *, hw, tile_hw):
    n, hw_padded, kfeat = patches_bf16.shape
    cpad = w_bf16.shape[-1]
    dpad = rw.shape[-1]
    num_tiles = hw_padded // tile_hw
    needs_mask = hw_padded != hw

    kernel = functools.partial(fused_stem_gap_ridge_kernel,
                               inv_hw=1.0 / float(hw), hw=hw,
                               needs_mask=needs_mask)

    def call(dim_semantics):
        return pl.pallas_call(
            kernel,
            out_shape=jax.ShapeDtypeStruct((n, 8, dpad), jnp.float32),
            grid_spec=pltpu.PrefetchScalarGridSpec(
                num_scalar_prefetch=0,
                grid=(n, num_tiles),
                in_specs=[
                    # Streamed, pipelined patch tiles (K left at 147 in HBM:
                    # full-extent last block dim — review #2).
                    pl.BlockSpec((1, tile_hw, kfeat), lambda i, t: (i, t, 0)),
                    # Loop-invariant operands: resident across the whole grid.
                    pl.BlockSpec((kfeat, cpad), lambda i, t: (0, 0)),
                    pl.BlockSpec((1, cpad), lambda i, t: (0, 0)),
                    pl.BlockSpec((1, cpad), lambda i, t: (0, 0)),
                    pl.BlockSpec((cpad, dpad), lambda i, t: (0, 0)),
                    pl.BlockSpec((1, dpad), lambda i, t: (0, 0)),
                ],
                out_specs=pl.BlockSpec((1, 8, dpad), lambda i, t: (i, 0, 0)),
                scratch_shapes=[pltpu.VMEM((1, cpad), jnp.float32)],
            ),
            compiler_params=pltpu.CompilerParams(
                dimension_semantics=dim_semantics,
                vmem_limit_bytes=_vmem_limit_bytes(tile_hw, kfeat, cpad, dpad),
            ),
        )(patches_bf16, w_bf16, scale, shift, rw, rb)

    try:
        out = call(_preferred_dim_semantics())
    except Exception:
        # Safe fallback (identical math) if CORE_PARALLEL fails to lower on
        # some generation; v5e/v6e always take the PARALLEL path directly.
        out = call((pltpu.PARALLEL, pltpu.ARBITRARY))
    return out[:, 0, :]                                       # (N, Dpad)


# ----------------------------------------------------------------------------
# Glue (plain JAX): layout conversion, im2col, parameter prep
# ----------------------------------------------------------------------------
def _im2col_nhwc(x_nhwc, kh, kw, stride, pad):
    """Extract conv patches.  Feature ordering is (ki, kj, cin)."""
    # TODO(synk): review #1 — replace this HBM-materialized im2col with
    # in-kernel patch construction from the raw padded NHWC input.
    x = jnp.pad(x_nhwc, ((0, 0), (pad, pad), (pad, pad), (0, 0)))
    n, hp, wp, c = x.shape
    ho = (hp - kh) // stride + 1
    wo = (wp - kw) // stride + 1
    cols = []
    for i in range(kh):
        for j in range(kw):
            cols.append(x[:, i: i + stride * ho: stride,
                           j: j + stride * wo: stride, :])
    patches = jnp.stack(cols, axis=3)                 # (N, Ho, Wo, kh*kw, C)
    return patches.reshape(n, ho, wo, kh * kw * c), ho, wo


class InferenceEncoderPallas:
    """JAX/Pallas counterpart of InferenceEncoder.forward: z = model(x)."""

    def __init__(self, key, in_ch=3, conv_out=32, ridge_out=8,
                 kh=7, kw=7, stride=2, pad=3, eps=1e-5):
        self.kh, self.kw, self.stride, self.pad = kh, kw, stride, pad
        self.conv_out, self.ridge_out = conv_out, ridge_out
        k = jax.random.split(key, 6)

        # Conv weight in PyTorch layout (Cout, Cin, kh, kw)
        self.conv_w_oihw = 0.1 * jax.random.normal(
            k[0], (conv_out, in_ch, kh, kw), jnp.float32)
        # BatchNorm (inference) parameters, folded into scale/shift
        gamma = 1.0 + 0.1 * jax.random.normal(k[1], (conv_out,), jnp.float32)
        beta = 0.1 * jax.random.normal(k[2], (conv_out,), jnp.float32)
        mean = 0.1 * jax.random.normal(k[3], (conv_out,), jnp.float32)
        var = jnp.abs(jax.random.normal(k[4], (conv_out,), jnp.float32)) + 0.5
        self.bn_scale = gamma / jnp.sqrt(var + eps)
        self.bn_shift = beta - mean * self.bn_scale
        # Ridge head (linear): features -> ridge_out
        self.ridge_w = 0.1 * jax.random.normal(
            k[5], (conv_out, ridge_out), jnp.float32)
        self.ridge_b = jnp.zeros((ridge_out,), jnp.float32)

        # ---- GEMM-layout parameters ----------------------------------------
        # K (= kh*kw*Cin = 147) stays unpadded in HBM (review #2); only the
        # lane-facing dims (Cout, ridge_out) are padded to 128.
        self.k_feat = kh * kw * in_ch
        self.cpad = _round_up(conv_out, 128)          # 32 -> 128
        self.dpad = _round_up(ridge_out, 128)         # 8  -> 128

        # Conv weight (kh*kw*Cin, Cout) matching im2col (ki, kj, cin) ordering,
        # zero-padded only along Cout, cast to bf16 for the MXU.
        w_gemm = jnp.transpose(self.conv_w_oihw, (2, 3, 1, 0)).reshape(
            self.k_feat, conv_out)
        self.conv_w_gemm = jnp.zeros(
            (self.k_feat, self.cpad), jnp.float32
        ).at[:, :conv_out].set(w_gemm).astype(jnp.bfloat16)

        # Folded-BN scale/shift: zeros in padded channels so padded columns of
        # the GEMM output stay exactly zero (no leakage into GAP / ridge).
        self.bn_scale_pad = jnp.zeros((1, self.cpad), jnp.float32
                                      ).at[0, :conv_out].set(self.bn_scale)
        self.bn_shift_pad = jnp.zeros((1, self.cpad), jnp.float32
                                      ).at[0, :conv_out].set(self.bn_shift)

        # Ridge head: zero-padded rows (input channels) and cols (outputs).
        self.ridge_w_pad = jnp.zeros((self.cpad, self.dpad), jnp.float32
                                     ).at[:conv_out, :ridge_out].set(self.ridge_w)
        self.ridge_b_pad = jnp.zeros((1, self.dpad), jnp.float32
                                     ).at[0, :ridge_out].set(self.ridge_b)

    def __call__(self, x_nchw):
        # layout: input is NCHW (PyTorch convention), converted to NHWC here.
        x_nhwc = jnp.transpose(x_nchw, (0, 2, 3, 1)).astype(jnp.float32)
        n = x_nhwc.shape[0]
        patches, ho, wo = _im2col_nhwc(
            x_nhwc, self.kh, self.kw, self.stride, self.pad)
        hw = ho * wo
        # (N, HW, K=147): NOT K-padded in HBM; bf16 stream to halve HBM bytes
        # (intentional inference precision contract, f32 accumulation on MXU).
        patches = patches.reshape(n, hw, self.k_feat).astype(jnp.bfloat16)

        tile_hw = _pick_tile_hw(hw)
        num_tiles = pl.cdiv(hw, tile_hw)
        hw_padded = num_tiles * tile_hw
        if hw_padded != hw:
            # cdiv tiling: pad rows are zero patches, masked in-kernel pre-GAP.
            patches = jnp.pad(patches, ((0, 0), (0, hw_padded - hw), (0, 0)))

        z_pad = _fused_forward(
            patches, self.conv_w_gemm,
            self.bn_scale_pad, self.bn_shift_pad,
            self.ridge_w_pad, self.ridge_b_pad,
            hw=hw, tile_hw=tile_hw,
        )                                             # (N, Dpad)
        return z_pad[:, : self.ridge_out]             # (N, ridge_out)


# ----------------------------------------------------------------------------
# Reference (plain JAX/XLA) for a correctness sanity check
# ----------------------------------------------------------------------------
def _reference(enc, x_nchw):
    # Match the kernel's bf16-input / f32-accumulate conv.
    y = jax.lax.conv_general_dilated(
        x_nchw.astype(jnp.bfloat16), enc.conv_w_oihw.astype(jnp.bfloat16),
        window_strides=(enc.stride, enc.stride),
        padding=((enc.pad, enc.pad), (enc.pad, enc.pad)),
        dimension_numbers=("NCHW", "OIHW", "NCHW"),
        preferred_element_type=jnp.float32)
    y = y * enc.bn_scale[None, :, None, None] + enc.bn_shift[None, :, None, None]
    y = jnp.maximum(y, 0.0)
    pooled = jnp.mean(y, axis=(2, 3))                  # (N, Cout)
    return pooled @ enc.ridge_w + enc.ridge_b


# ----------------------------------------------------------------------------
if __name__ == "__main__":
    key = jax.random.PRNGKey(0)
    k_param, k_x = jax.random.split(key)

    # Small image batch, NCHW like PyTorch: (batch=2, channels=3, 16, 16)
    x = jax.random.normal(k_x, (2, 3, 16, 16), jnp.float32)

    enc = InferenceEncoderPallas(k_param)
    z = enc(x)
    z = jax.block_until_ready(z)

    z_ref = _reference(enc, x)
    assert z.shape == (2, 8)
    # bf16 matmul inputs (f32 accumulation) in both paths -> loose-ish tol.
    assert jnp.allclose(z, z_ref, rtol=1e-2, atol=1e-2), "mismatch vs XLA reference"

    print("KERNEL_OK")
</pallas_src>

<mosaic_0001>
module attributes {stable_mosaic.version = 11 : i64} {
  func.func @fused_stem_gap_ridge_kernel(%arg0: i32, %arg1: i32, %arg2: memref<1x64x147xbf16, #tpu.memory_space<vmem>>, %arg3: memref<147x128xbf16, #tpu.memory_space<vmem>>, %arg4: memref<1x128xf32, #tpu.memory_space<vmem>>, %arg5: memref<1x128xf32, #tpu.memory_space<vmem>>, %arg6: memref<128x128xf32, #tpu.memory_space<vmem>>, %arg7: memref<1x128xf32, #tpu.memory_space<vmem>>, %arg8: memref<1x8x128xf32, #tpu.memory_space<vmem>>, %arg9: memref<1x128xf32, #tpu.memory_space<vmem>>) attributes {dimension_semantics = [#tpu.dimension_semantics<parallel>, #tpu.dimension_semantics<arbitrary>], iteration_bounds = array<i64: 2, 1>, scalar_prefetch = 0 : i64, scratch_operands = 1 : i64, tpu.core_type = #tpu.core_type<tc>, window_params = [{transform_indices = @transform_0, window_bounds = array<i64: 1, 64, 147>}, {pipeline_mode = #tpu.pipeline_mode<synchronous>, transform_indices = @transform_1, window_bounds = array<i64: 147, 128>}, {pipeline_mode = #tpu.pipeline_mode<synchronous>, transform_indices = @transform_2, window_bounds = array<i64: 1, 128>}, {pipeline_mode = #tpu.pipeline_mode<synchronous>, transform_indices = @transform_3, window_bounds = array<i64: 1, 128>}, {pipeline_mode = #tpu.pipeline_mode<synchronous>, transform_indices = @transform_4, window_bounds = array<i64: 128, 128>}, {pipeline_mode = #tpu.pipeline_mode<synchronous>, transform_indices = @transform_5, window_bounds = array<i64: 1, 128>}, {transform_indices = @transform_6, window_bounds = array<i64: 1, 8, 128>}]} {
    %c0_i32 = arith.constant 0 : i32
    %0 = arith.cmpi eq, %arg1, %c0_i32 : i32
    %1 = arith.extui %0 : i1 to i32
    %c0_i32_0 = arith.constant 0 : i32
    %2 = arith.cmpi ne, %1, %c0_i32_0 : i32
    scf.if %2 {
      %cst_17 = arith.constant 0.000000e+00 : f32
      %23 = vector.broadcast %cst_17 : f32 to vector<1x128xf32>
      %c0_18 = arith.constant 0 : index
      %c0_19 = arith.constant 0 : index
      %24 = vector.load %arg9[%c0_18, %c0_19] : memref<1x128xf32, #tpu.memory_space<vmem>>, vector<1x128xf32>
      tpu.vector_store %arg9[%c0_18, %c0_19], %23 {strides = array<i32>} : memref<1x128xf32, #tpu.memory_space<vmem>>, vector<1x128xf32>,
    } else {
    }
    %c0 = arith.constant 0 : index
    %c0_1 = arith.constant 0 : index
    %c0_2 = arith.constant 0 : index
    %3 = vector.load %arg2[%c0, %c0_1, %c0_2] : memref<1x64x147xbf16, #tpu.memory_space<vmem>>, vector<1x64x147xbf16>
    %4 = vector.shape_cast %3 : vector<1x64x147xbf16> to vector<64x147xbf16>
    %c0_3 = arith.constant 0 : index
    %c0_4 = arith.constant 0 : index
    %5 = vector.load %arg3[%c0_3, %c0_4] : memref<147x128xbf16, #tpu.memory_space<vmem>>, vector<147x128xbf16>
    %cst = arith.constant dense<0.000000e+00> : vector<64x128xf32>
    %6 = tpu.matmul %4, %5, %cst {dimension_numbers = #tpu.dot_dimension_numbers<[1], [0], [0], [1], [0, 0, 1, 1], [], []>} : vector<64x147xbf16>, vector<147x128xbf16>, vector<64x128xf32> -> vector<64x128xf32>
    %c0_5 = arith.constant 0 : index
    %c0_6 = arith.constant 0 : index
    %7 = vector.load %arg4[%c0_5, %c0_6] : memref<1x128xf32, #tpu.memory_space<vmem>>, vector<1x128xf32>
    %8 = vector.broadcast %7 : vector<1x128xf32> to vector<64x128xf32>
    %9 = arith.mulf %6, %8 : vector<64x128xf32>
    %c0_7 = arith.constant 0 : index
    %c0_8 = arith.constant 0 : index
    %10 = vector.load %arg5[%c0_7, %c0_8] : memref<1x128xf32, #tpu.memory_space<vmem>>, vector<1x128xf32>
    %11 = vector.broadcast %10 : vector<1x128xf32> to vector<64x128xf32>
    %12 = arith.addf %9, %11 : vector<64x128xf32>
    %cst_9 = arith.constant 0.000000e+00 : f32
    %13 = vector.broadcast %cst_9 : f32 to vector<64x128xf32>
    %14 = arith.maximumf %12, %13 : vector<64x128xf32>
    %c0_10 = arith.constant 0 : index
    %c0_11 = arith.constant 0 : index
    %15 = vector.load %arg9[%c0_10, %c0_11] : memref<1x128xf32, #tpu.memory_space<vmem>>, vector<1x128xf32>
    %cst_12 = arith.constant dense<0.000000e+00> : vector<128xf32>
    %16 = vector.multi_reduction <add>, %14, %cst_12 [0] : vector<64x128xf32> to vector<128xf32>
    %17 = vector.shape_cast %16 : vector<128xf32> to vector<1x128xf32>
    %18 = arith.addf %15, %17 : vector<1x128xf32>
    %c0_13 = arith.constant 0 : index
    %c0_14 = arith.constant 0 : index
    %19 = vector.load %arg9[%c0_13, %c0_14] : memref<1x128xf32, #tpu.memory_space<vmem>>, vector<1x128xf32>
    tpu.vector_store %arg9[%c0_13, %c0_14], %18 {strides = array<i32>} : memref<1x128xf32, #tpu.memory_space<vmem>>, vector<1x128xf32>,
    %c0_i32_15 = arith.constant 0 : i32
    %20 = arith.cmpi eq, %arg1, %c0_i32_15 : i32
    %21 = arith.extui %20 : i1 to i32
    %c0_i32_16 = arith.constant 0 : i32
    %22 = arith.cmpi ne, %21, %c0_i32_16 : i32
    scf.if %22 {
      %c0_17 = arith.constant 0 : index
      %c0_18 = arith.constant 0 : index
      %23 = vector.load %arg9[%c0_17, %c0_18] : memref<1x128xf32, #tpu.memory_space<vmem>>, vector<1x128xf32>
      %cst_19 = arith.constant 1.562500e-02 : f32
      %24 = vector.broadcast %cst_19 : f32 to vector<1x128xf32>
      %25 = arith.mulf %23, %24 : vector<1x128xf32>
      %c0_20 = arith.constant 0 : index
      %c0_21 = arith.constant 0 : index
      %26 = vector.load %arg6[%c0_20, %c0_21] : memref<128x128xf32, #tpu.memory_space<vmem>>, vector<128x128xf32>
      %cst_22 = arith.constant dense<0.000000e+00> : vector<1x128xf32>
      %27 = tpu.matmul %25, %26, %cst_22 {dimension_numbers = #tpu.dot_dimension_numbers<[1], [0], [0], [1], [0, 0, 1, 1], [], []>, precision = #tpu.contract_precision<fp32>} : vector<1x128xf32>, vector<128x128xf32>, vector<1x128xf32> -> vector<1x128xf32>
      %c0_23 = arith.constant 0 : index
      %c0_24 = arith.constant 0 : index
      %28 = vector.load %arg7[%c0_23, %c0_24] : memref<1x128xf32, #tpu.memory_space<vmem>>, vector<1x128xf32>
      %29 = arith.addf %27, %28 : vector<1x128xf32>
      %30 = vector.shape_cast %29 : vector<1x128xf32> to vector<1x1x128xf32>
      %31 = vector.shape_cast %30 : vector<1x1x128xf32> to vector<1x1x128xf32>
      %32 = vector.broadcast %31 : vector<1x1x128xf32> to vector<1x8x128xf32>
      %c0_25 = arith.constant 0 : index
      %c0_26 = arith.constant 0 : index
      %c0_27 = arith.constant 0 : index
      %33 = vector.load %arg8[%c0_25, %c0_26, %c0_27] : memref<1x8x128xf32, #tpu.memory_space<vmem>>, vector<1x8x128xf32>
      tpu.vector_store %arg8[%c0_25, %c0_26, %c0_27], %32 {strides = array<i32>} : memref<1x8x128xf32, #tpu.memory_space<vmem>>, vector<1x8x128xf32>,
    } else {
    }
    return
  }
  func.func @transform_0(%arg0: i32, %arg1: i32) -> (i32, i32, i32) {
    %c0_i32 = arith.constant 0 : i32
    %c0_i32_0 = arith.constant 0 : i32
    return %arg0, %arg1, %c0_i32 : i32, i32, i32
  }
  func.func @transform_1(%arg0: i32, %arg1: i32) -> (i32, i32) {
    %c0_i32 = arith.constant 0 : i32
    %c0_i32_0 = arith.constant 0 : i32
    %c0_i32_1 = arith.constant 0 : i32
    return %c0_i32, %c0_i32_0 : i32, i32
  }
  func.func @transform_2(%arg0: i32, %arg1: i32) -> (i32, i32) {
    %c0_i32 = arith.constant 0 : i32
    %c0_i32_0 = arith.constant 0 : i32
    %c0_i32_1 = arith.constant 0 : i32
    return %c0_i32, %c0_i32_0 : i32, i32
  }
  func.func @transform_3(%arg0: i32, %arg1: i32) -> (i32, i32) {
    %c0_i32 = arith.constant 0 : i32
    %c0_i32_0 = arith.constant 0 : i32
    %c0_i32_1 = arith.constant 0 : i32
    return %c0_i32, %c0_i32_0 : i32, i32
  }
  func.func @transform_4(%arg0: i32, %arg1: i32) -> (i32, i32) {
    %c0_i32 = arith.constant 0 : i32
    %c0_i32_0 = arith.constant 0 : i32
    %c0_i32_1 = arith.constant 0 : i32
    return %c0_i32, %c0_i32_0 : i32, i32
  }
  func.func @transform_5(%arg0: i32, %arg1: i32) -> (i32, i32) {
    %c0_i32 = arith.constant 0 : i32
    %c0_i32_0 = arith.constant 0 : i32
    %c0_i32_1 = arith.constant 0 : i32
    return %c0_i32, %c0_i32_0 : i32, i32
  }
  func.func @transform_6(%arg0: i32, %arg1: i32) -> (i32, i32, i32) {
    %c0_i32 = arith.constant 0 : i32
    %c0_i32_0 = arith.constant 0 : i32
    %c0_i32_1 = arith.constant 0 : i32
    return %arg0, %c0_i32, %c0_i32_0 : i32, i32, i32
  }
}

module attributes {stable_mosaic.version = 11 : i64} {
  func.func @fused_stem_gap_ridge_kernel(%arg0: i32, %arg1: i32, %arg2: memref<1x64x147xbf16, #tpu.memory_space<vmem>>, %arg3: memref<147x128xbf16, #tpu.memory_space<vmem>>, %arg4: memref<1x128xf32, #tpu.memory_space<vmem>>, %arg5: memref<1x128xf32, #tpu.memory_space<vmem>>, %arg6: memref<128x128xf32, #tpu.memory_space<vmem>>, %arg7: memref<1x128xf32, #tpu.memory_space<vmem>>, %arg8: memref<1x8x128xf32, #tpu.memory_space<vmem>>, %arg9: memref<1x128xf32, #tpu.memory_space<vmem>>) attributes {dimension_semantics = [#tpu.dimension_semantics<parallel>, #tpu.dimension_semantics<arbitrary>], iteration_bounds = array<i64: 2, 1>, scalar_prefetch = 0 : i64, scratch_operands = 1 : i64, tpu.core_type = #tpu.core_type<tc>, window_params = [{transform_indices = @transform_0, window_bounds = array<i64: 1, 64, 147>}, {pipeline_mode = #tpu.pipeline_mode<synchronous>, transform_indices = @transform_1, window_bounds = array<i64: 147, 128>}, {pipeline_mode = #tpu.pipeline_mode<synchronous>, transform_indices = @transform_2, window_bounds = array<i64: 1, 128>}, {pipeline_mode = #tpu.pipeline_mode<synchronous>, transform_indices = @transform_3, window_bounds = array<i64: 1, 128>}, {pipeline_mode = #tpu.pipeline_mode<synchronous>, transform_indices = @transform_4, window_bounds = array<i64: 128, 128>}, {pipeline_mode = #tpu.pipeline_mode<synchronous>, transform_indices = @transform_5, window_bounds = array<i64: 1, 128>}, {transform_indices = @transform_6, window_bounds = array<i64: 1, 8, 128>}]} {
    %c0_i32 = arith.constant 0 : i32
    %0 = arith.cmpi eq, %arg1, %c0_i32 : i32
    %1 = arith.extui %0 : i1 to i32
    %c0_i32_0 = arith.constant 0 : i32
    %2 = arith.cmpi ne, %1, %c0_i32_0 : i32
    scf.if %2 {
      %cst_17 = arith.constant 0.000000e+00 : f32
      %23 = vector.broadcast %cst_17 : f32 to vector<1x128xf32>
      %c0_18 = arith.constant 0 : index
      %c0_19 = arith.constant 0 : index
      %24 = vector.load %arg9[%c0_18, %c0_19] : memref<1x128xf32, #tpu.memory_space<vmem>>, vector<1x128xf32>
      tpu.vector_store %arg9[%c0_18, %c0_19], %23 {strides = array<i32>} : memref<1x128xf32, #tpu.memory_space<vmem>>, vector<1x128xf32>,
    } else {
    }
    %c0 = arith.constant 0 : index
    %c0_1 = arith.constant 0 : index
    %c0_2 = arith.constant 0 : index
    %3 = vector.load %arg2[%c0, %c0_1, %c0_2] : memref<1x64x147xbf16, #tpu.memory_space<vmem>>, vector<1x64x147xbf16>
    %4 = vector.shape_cast %3 : vector<1x64x147xbf16> to vector<64x147xbf16>
    %c0_3 = arith.constant 0 : index
    %c0_4 = arith.constant 0 : index
    %5 = vector.load %arg3[%c0_3, %c0_4] : memref<147x128xbf16, #tpu.memory_space<vmem>>, vector<147x128xbf16>
    %cst = arith.constant dense<0.000000e+00> : vector<64x128xf32>
    %6 = tpu.matmul %4, %5, %cst {dimension_numbers = #tpu.dot_dimension_numbers<[1], [0], [0], [1], [0, 0, 1, 1], [], []>} : vector<64x147xbf16>, vector<147x128xbf16>, vector<64x128xf32> -> vector<64x128xf32>
    %c0_5 = arith.constant 0 : index
    %c0_6 = arith.constant 0 : index
    %7 = vector.load %arg4[%c0_5, %c0_6] : memref<1x128xf32, #tpu.memory_space<vmem>>, vector<1x128xf32>
    %8 = vector.broadcast %7 : vector<1x128xf32> to vector<64x128xf32>
    %9 = arith.mulf %6, %8 : vector<64x128xf32>
    %c0_7 = arith.constant 0 : index
    %c0_8 = arith.constant 0 : index
    %10 = vector.load %arg5[%c0_7, %c0_8] : memref<1x128xf32, #tpu.memory_space<vmem>>, vector<1x128xf32>
    %11 = vector.broadcast %10 : vector<1x128xf32> to vector<64x128xf32>
    %12 = arith.addf %9, %11 : vector<64x128xf32>
    %cst_9 = arith.constant 0.000000e+00 : f32
    %13 = vector.broadcast %cst_9 : f32 to vector<64x128xf32>
    %14 = arith.maximumf %12, %13 : vector<64x128xf32>
    %c0_10 = arith.constant 0 : index
    %c0_11 = arith.constant 0 : index
    %15 = vector.load %arg9[%c0_10, %c0_11] : memref<1x128xf32, #tpu.memory_space<vmem>>, vector<1x128xf32>
    %cst_12 = arith.constant dense<0.000000e+00> : vector<128xf32>
    %16 = vector.multi_reduction <add>, %14, %cst_12 [0] : vector<64x128xf32> to vector<128xf32>
    %17 = vector.shape_cast %16 : vector<128xf32> to vector<1x128xf32>
    %18 = arith.addf %15, %17 : vector<1x128xf32>
    %c0_13 = arith.constant 0 : index
    %c0_14 = arith.constant 0 : index
    %19 = vector.load %arg9[%c0_13, %c0_14] : memref<1x128xf32, #tpu.memory_space<vmem>>, vector<1x128xf32>
    tpu.vector_store %arg9[%c0_13, %c0_14], %18 {strides = array<i32>} : memref<1x128xf32, #tpu.memory_space<vmem>>, vector<1x128xf32>,
    %c0_i32_15 = arith.constant 0 : i32
    %20 = arith.cmpi eq, %arg1, %c0_i32_15 : i32
    %21 = arith.extui %20 : i1 to i32
    %c0_i32_16 = arith.constant 0 : i32
    %22 = arith.cmpi ne, %21, %c0_i32_16 : i32
    scf.if %22 {
      %c0_17 = arith.constant 0 : index
      %c0_18 = arith.constant 0 : index
      %23 = vector.load %arg9[%c0_17, %c0_18] : memref<1x128xf32, #tpu.memory_space<vmem>>, vector<1x128xf32>
      %cst_19 = arith.constant 1.562500e-02 : f32
      %24 = vector.broadcast %cst_19 : f32 to vector<1x128xf32>
      %25 = arith.mulf %23, %24 : vector<1x128xf32>
      %c0_20 = arith.constant 0 : index
      %c0_21 = arith.constant 0 : index
      %26 = vector.load %arg6[%c0_20, %c0_21] : memref<128x128xf32, #tpu.memory_space<vmem>>, vector<128x128xf32>
      %cst_22 = arith.constant dense<0.000000e+00> : vector<1x128xf32>
      %27 = tpu.matmul %25, %26, %cst_22 {dimension_numbers = #tpu.dot_dimension_numbers<[1], [0], [0], [1], [0, 0, 1, 1], [], []>, precision = #tpu.contract_precision<fp32>} : vector<1x128xf32>, vector<128x128xf32>, vector<1x128xf32> -> vector<1x128xf32>
      %c0_23 = arith.constant 0 : index
      %c0_24 = arith.constant 0 : index
      %28 = vector.load %arg7[%c0_23, %c0_24] : memref<1x128xf32, #tpu.memory_space<vmem>>, vector<1x128xf32>
      %29 = arith.addf %27, %28 : vector<1x128xf32>
      %30 = vector.shape_cast %29 : vector<1x128xf32> to vector<1x1x128xf32>
      %31 = vector.shape_cast %30 : vector<1x1x128xf32> to vector<1x1x128xf32>
      %32 = vector.broadcast %31 : vector<1x1x128xf32> to vector<1x8x128xf32>
      %c0_25 = arith.constant 0 : index
      %c0_26 = arith.constant 0 : index
      %c0_27 = arith.constant 0 : index
      %33 = vector.load %arg8[%c0_25, %c0_26, %c0_27] : memref<1x8x128xf32, #tpu.memory_space<vmem>>, vector<1x8x128xf32>
      tpu.vector_store %arg8[%c0_25, %c0_26, %c0_27], %32 {strides = array<i32>} : memref<1x8x128xf32, #tpu.memory_space<vmem>>, vector<1x8x128xf32>,
    } else {
    }
    return
  }
  func.func @transform_0(%arg0: i32, %arg1: i32) -> (i32, i32, i32) {
    %c0_i32 = arith.constant 0 : i32
    %c0_i32_0 = arith.constant 0 : i32
    return %arg0, %arg1, %c0_i32 : i32, i32, i32
  }
  func.func @transform_1(%arg0: i32, %arg1: i32) -> (i32, i32) {
    %c0_i32 = arith.constant 0 : i32
    %c0_i32_0 = arith.constant 0 : i32
    %c0_i32_1 = arith.constant 0 : i32
    return %c0_i32, %c0_i32_0 : i32, i32
  }
  func.func @transform_2(%arg0: i32, %arg1: i32) -> (i32, i32) {
    %c0_i32 = arith.constant 0 : i32
    %c0_i32_0 = arith.constant 0 : i32
    %c0_i32_1 = arith.constant 0 : i32
    return %c0_i32, %c0_i32_0 : i32, i32
  }
  func.func @transform_3(%arg0: i32, %arg1: i32) -> (i32, i32) {
    %c0_i32 = arith.constant 0 : i32
    %c0_i32_0 = arith.constant 0 : i32
    %c0_i32_1 = arith.constant 0 : i32
    return %c0_i32, %c0_i32_0 : i32, i32
  }
  func.func @transform_4(%arg0: i32, %arg1: i32) -> (i32, i32) {
    %c0_i32 = arith.constant 0 : i32
    %c0_i32_0 = arith.constant 0 : i32
    %c0_i32_1 = arith.constant 0 : i32
    return %c0_i32, %c0_i32_0 : i32, i32
  }
  func.func @transform_5(%arg0: i32, %arg1: i32) -> (i32, i32) {
    %c0_i32 = arith.constant 0 : i32
    %c0_i32_0 = arith.constant 0 : i32
    %c0_i32_1 = arith.constant 0 : i32
    return %c0_i32, %c0_i32_0 : i32, i32
  }
  func.func @transform_6(%arg0: i32, %arg1: i32) -> (i32, i32, i32) {
    %c0_i32 = arith.constant 0 : i32
    %c0_i32_0 = arith.constant 0 : i32
    %c0_i32_1 = arith.constant 0 : i32
    return %arg0, %c0_i32, %c0_i32_0 : i32, i32, i32
  }
}

</mosaic_0001>

<llo_original>
// kernel: tpu_custom_call.1
$region0: #{tpu_custom_call.1}
  #allocation0 [shape = 'u32[]', space=smem, size = 0x4, offset = 0x4, fixed_abs, tag = 'smem constant byte address 0x4 - core index']
  #allocation1 [shape = 'u32[144,128]{1,0:T(1,128)}', space=vmem, size = 0x12000, scoped, tag = 'internal scratch']
  #allocation2 [shape = 'f32[1,128]{1,0:T(1,128)}', space=vmem, size = 0x200, scoped, tag = 'scratch operand']
  %s0 = inlined_call_operand.hbm [shape: bf16[2,64,147], index: 0, kind: input, shape index: {}]
  %s1 = inlined_call_operand.hbm [shape: bf16[147,128], index: 1, kind: input, shape index: {}]
  %s2 = inlined_call_operand.vmem [shape: f32[1,128], index: 2, kind: input, shape index: {}]
  %s3 = inlined_call_operand.vmem [shape: f32[1,128], index: 3, kind: input, shape index: {}]
  %s4 = inlined_call_operand.hbm [shape: f32[128,128], index: 4, kind: input, shape index: {}]
  %s5 = inlined_call_operand.vmem [shape: f32[1,128], index: 5, kind: input, shape index: {}]
  %s6 = inlined_call_operand.hbm [shape: f32[2,8,128], index: 6, kind: output, shape index: {}]
  %s7 = sld [smem:[#allocation0]]
  $region77: #{tpu_custom_call.1} parent=0
    _
  %s9 = ssub.s32 1, %s7
  %s10 = scalar_select 0, %s9, %s7
  $region1: #{tpu_custom_call.1} parent=0
    #allocation3 [shape = 'u8[65536]{0}', space=vmem, size = 0x10000, scoped, tag = 'input window, operand 0']
    #allocation4 [shape = 's32[2]{0}', space=sflag, size = 0x8, scoped, tag = 'scoped memory for tpu_custom_call.1']
    #allocation5 [shape = 's32[2]{0}', space=sflag, size = 0x8, scoped, tag = 'scoped memory for tpu_custom_call.1']
    #allocation6 [shape = 'u8[38912]{0}', space=vmem, size = 0x9800, scoped, tag = 'input window, operand 1, single buffered']
    #allocation7 [shape = 's32[1]{0}', space=sflag, size = 0x4, scoped, tag = 'scoped memory for tpu_custom_call.1']
    #allocation8 [shape = 'u8[65536]{0}', space=vmem, size = 0x10000, scoped, tag = 'input window, operand 4, single buffered']
    #allocation9 [shape = 'u8[8192]{0}', space=vmem, size = 0x2000, scoped, tag = 'output window, operand 0']
    %11 = vsyncpa [#allocation4], 0
    %s12 = scalar_lea.sflag [#allocation4], 1
    %13 = vsyncpa %s12, 0
    %14 = vsyncpa [#allocation7], 0
    %15 = vsyncpa [#allocation5], 0
    %s16 = scalar_lea.sflag [#allocation5], 1
    %17 = vsyncpa %s16, 0
    loop: start=0, step=1, limit=4
    $region2: #{tpu_custom_call.1} parent=1 // loop_pre_header
      _
    $region3: #{tpu_custom_call.1} parent=1 // loop_header
      %s19 = sphi 0, %s23
      %p20 = scmp.ge.s32.totalorder %s19, 4
      %s26 = sphi 0, %s38
      %s27 = sphi 0, %s34
      %s28 = sphi 0, %s26
      %s29 = sphi 0, %s27
      %s30 = sphi 0, %s28
      %s31 = sphi 0, %s29
      %s43 = sphi 0, %s45
      %s46 = sphi 0, %s43
      %s47 = sphi 0, %s46
      %s63 = sphi 0, %s47
      %s67 = sphi 0, %s67
      %s69 = sphi 0, %s67
      %s70 = sphi 0, %s69
      %s84 = sphi 0, %s70
      %s88 = sphi 0, %s88
      %s90 = sphi 0, %s88
      %s91 = sphi 0, %s90
      %s105 = sphi 0, %s91
      %s109 = sphi 0, %s109
      %s111 = sphi 0, %s109
      %s112 = sphi 0, %s111
      %s126 = sphi 0, %s112
      %s130 = sphi 0, %s130
      %s132 = sphi 0, %s130
      %s133 = sphi 0, %s132
      %s147 = sphi 0, %s133
      %s151 = sphi 0, %s151
      %s153 = sphi 0, %s151
      %s154 = sphi 0, %s153
      %s168 = sphi 0, %s154
      %s174 = sphi 0, %s176
      %s177 = sphi 0, %s174
      %s178 = sphi 0, %s177
      %s194 = sphi 0, %s178
    $region4: #{tpu_custom_call.1} parent=1 // loop_header_branch
      %22 = sbr.rel (%p20) target = $region8
    $region5: #{tpu_custom_call.1} parent=1 // loop_body
      %s24 = ssub.s32 %s19, 1
      %s25 = ssub.s32 %s19, 2
      %s32 = sadd.s32 1, %s27
      %p33 = scmp.ge.s32.totalorder %s32, 1
      %s34 = scalar_select %p33, 0, %s32
      %s35 = sadd.s32 1, %s26
      %s36 = scalar_select %p33, %s35, %s26
      %p37 = scmp.ge.s32.totalorder %s36, 2
      %s38 = scalar_select %p37, 0, %s36
      %s39 = ssub.s32 %s26, %s38
      %s40 = ssub.s32 %s27, %s34
      %s41 = sor.u32 %s39, %s40
      %p42 = scmp.eq.s32.totalorder %s41, 0
      %s44 = sadd.s32 %s43, 1
      %s45 = scalar_select %p42, %s43, %s44
      %p48 = pneg %p42
      %p49 = scmp.eq.s32.totalorder %s19, 1
      %p50 = por %p48, %p49
      %p51 = scmp.ne.s32.totalorder %s43, %s46
      %p52 = scmp.eq.s32.totalorder %s19, 0
      %p53 = por %p51, %p52
      %p54 = scmp.ne.s32.totalorder %s43, %s46
      %p55 = scmp.eq.s32.totalorder %s24, 1
      %p56 = por %p54, %p55
      %p57 = scmp.ne.s32.totalorder %s46, %s47
      %p58 = scmp.eq.s32.totalorder %s24, 0
      %p59 = por %p57, %p58
      %p60 = scmp.ne.s32.totalorder %s46, %s47
      %p61 = scmp.eq.s32.totalorder %s25, 1
      %p62 = por %p60, %p61
      %p64 = scmp.ne.s32.totalorder %s47, %s63
      %p65 = scmp.eq.s32.totalorder %s25, 0
      %p66 = por %p64, %p65
      %s68 = sadd.s32 %s67, 1
      %p71 = scmp.eq.s32.totalorder %s19, 1
      %p72 = scmp.ne.s32.totalorder %s67, %s69
      %p73 = scmp.eq.s32.totalorder %s19, 0
      %p74 = por %p72, %p73
      %p75 = scmp.ne.s32.totalorder %s67, %s69
      %p76 = scmp.eq.s32.totalorder %s24, 1
      %p77 = por %p75, %p76
      %p78 = scmp.ne.s32.totalorder %s69, %s70
      %p79 = scmp.eq.s32.totalorder %s24, 0
      %p80 = por %p78, %p79
      %p81 = scmp.ne.s32.totalorder %s69, %s70
      %p82 = scmp.eq.s32.totalorder %s25, 1
      %p83 = por %p81, %p82
      %p85 = scmp.ne.s32.totalorder %s70, %s84
      %p86 = scmp.eq.s32.totalorder %s25, 0
      %p87 = por %p85, %p86
      %s89 = sadd.s32 %s88, 1
      %p92 = scmp.eq.s32.totalorder %s19, 1
      %p93 = scmp.ne.s32.totalorder %s88, %s90
      %p94 = scmp.eq.s32.totalorder %s19, 0
      %p95 = por %p93, %p94
      %p96 = scmp.ne.s32.totalorder %s88, %s90
      %p97 = scmp.eq.s32.totalorder %s24, 1
      %p98 = por %p96, %p97
      %p99 = scmp.ne.s32.totalorder %s90, %s91
      %p100 = scmp.eq.s32.totalorder %s24, 0
      %p101 = por %p99, %p100
      %p102 = scmp.ne.s32.totalorder %s90, %s91
      %p103 = scmp.eq.s32.totalorder %s25, 1
      %p104 = por %p102, %p103
      %p106 = scmp.ne.s32.totalorder %s91, %s105
      %p107 = scmp.eq.s32.totalorder %s25, 0
      %p108 = por %p106, %p107
      %s110 = sadd.s32 %s109, 1
      %p113 = scmp.eq.s32.totalorder %s19, 1
      %p114 = scmp.ne.s32.totalorder %s109, %s111
      %p115 = scmp.eq.s32.totalorder %s19, 0
      %p116 = por %p114, %p115
      %p117 = scmp.ne.s32.totalorder %s109, %s111
      %p118 = scmp.eq.s32.totalorder %s24, 1
      %p119 = por %p117, %p118
      %p120 = scmp.ne.s32.totalorder %s111, %s112
      %p121 = scmp.eq.s32.totalorder %s24, 0
      %p122 = por %p120, %p121
      %p123 = scmp.ne.s32.totalorder %s111, %s112
      %p124 = scmp.eq.s32.totalorder %s25, 1
      %p125 = por %p123, %p124
      %p127 = scmp.ne.s32.totalorder %s112, %s126
      %p128 = scmp.eq.s32.totalorder %s25, 0
      %p129 = por %p127, %p128
      %s131 = sadd.s32 %s130, 1
      %p134 = scmp.eq.s32.totalorder %s19, 1
      %p135 = scmp.ne.s32.totalorder %s130, %s132
      %p136 = scmp.eq.s32.totalorder %s19, 0
      %p137 = por %p135, %p136
      %p138 = scmp.ne.s32.totalorder %s130, %s132
      %p139 = scmp.eq.s32.totalorder %s24, 1
      %p140 = por %p138, %p139
      %p141 = scmp.ne.s32.totalorder %s132, %s133
      %p142 = scmp.eq.s32.totalorder %s24, 0
      %p143 = por %p141, %p142
      %p144 = scmp.ne.s32.totalorder %s132, %s133
      %p145 = scmp.eq.s32.totalorder %s25, 1
      %p146 = por %p144, %p145
      %p148 = scmp.ne.s32.totalorder %s133, %s147
      %p149 = scmp.eq.s32.totalorder %s25, 0
      %p150 = por %p148, %p149
      %s152 = sadd.s32 %s151, 1
      %p155 = scmp.eq.s32.totalorder %s19, 1
      %p156 = scmp.ne.s32.totalorder %s151, %s153
      %p157 = scmp.eq.s32.totalorder %s19, 0
      %p158 = por %p156, %p157
      %p159 = scmp.ne.s32.totalorder %s151, %s153
      %p160 = scmp.eq.s32.totalorder %s24, 1
      %p161 = por %p159, %p160
      %p162 = scmp.ne.s32.totalorder %s153, %s154
      %p163 = scmp.eq.s32.totalorder %s24, 0
      %p164 = por %p162, %p163
      %p165 = scmp.ne.s32.totalorder %s153, %s154
      %p166 = scmp.eq.s32.totalorder %s25, 1
      %p167 = por %p165, %p166
      %p169 = scmp.ne.s32.totalorder %s154, %s168
      %p170 = scmp.eq.s32.totalorder %s25, 0
      %p171 = por %p169, %p170
      %s172 = ssub.s32 %s26, %s38
      %p173 = scmp.eq.s32.totalorder %s172, 0
      %s175 = sadd.s32 %s174, 1
      %s176 = scalar_select %p173, %s174, %s175
      %p179 = pneg %p173
      %p180 = scmp.eq.s32.totalorder %s19, 1
      %p181 = por %p179, %p180
      %p182 = scmp.ne.s32.totalorder %s174, %s177
      %p183 = scmp.eq.s32.totalorder %s19, 0
      %p184 = por %p182, %p183
      %p185 = scmp.ne.s32.totalorder %s174, %s177
      %p186 = scmp.eq.s32.totalorder %s24, 1
      %p187 = por %p185, %p186
      %p188 = scmp.ne.s32.totalorder %s177, %s178
      %p189 = scmp.eq.s32.totalorder %s24, 0
      %p190 = por %p188, %p189
      %p191 = scmp.ne.s32.totalorder %s177, %s178
      %p192 = scmp.eq.s32.totalorder %s25, 1
      %p193 = por %p191, %p192
      %p195 = scmp.ne.s32.totalorder %s178, %s194
      %p196 = scmp.eq.s32.totalorder %s25, 0
      %p197 = por %p195, %p196
      %p198 = scmp.le.s32.totalorder 1, %s19
      %p199 = scmp.lt.s32.totalorder %s19, 3
      %p200 = pnand %p198, %p199
      %p201 = pneg %p200
      // Predicated region
      $region9: #{tpu_custom_call.1} parent=5 // pred_check
        _
      $region10: #{tpu_custom_call.1} parent=5 // pred_check_branch
        %203 = sbr.rel (%p200) target = $region12
      $region11: #{tpu_custom_call.1} parent=5 // pred_region
        %s204 = ssub.s32 %s19, 1
        // Predicated region
        $region13: #{tpu_custom_call.1} parent=11 // pred_check
          %p205 = pneg %p80
        $region14: #{tpu_custom_call.1} parent=11 // pred_check_branch
          %207 = sbr.rel (%p205) target = $region16
        $region15: #{tpu_custom_call.1} parent=11 // pred_region
          %s209 = ssub.s32 1216, 1216
          %210 = vsyncadd [#allocation7], %s209
          %s211 = sshll.u32 [#allocation6], 4
          %s212 = int_to_ptr.vmem [resolvable:$true] %s211
          %217 = dma.hbm_to_vmem [thread:$0]  %s1, 1216, %s212, [#allocation7], 64, 64, 4
        $region16: #{tpu_custom_call.1} parent=11 // pred_fallthru
          _
        // Predicated region
        $region17: #{tpu_custom_call.1} parent=11 // pred_check
          %p218 = pneg %p101
        $region18: #{tpu_custom_call.1} parent=11 // pred_check_branch
          %220 = sbr.rel (%p218) target = $region20
        $region19: #{tpu_custom_call.1} parent=11 // pred_region
          _
        $region20: #{tpu_custom_call.1} parent=11 // pred_fallthru
          _
        // Predicated region
        $region21: #{tpu_custom_call.1} parent=11 // pred_check
          %p221 = pneg %p122
        $region22: #{tpu_custom_call.1} parent=11 // pred_check_branch
          %223 = sbr.rel (%p221) target = $region24
        $region23: #{tpu_custom_call.1} parent=11 // pred_region
          _
        $region24: #{tpu_custom_call.1} parent=11 // pred_fallthru
          _
        // Predicated region
        $region25: #{tpu_custom_call.1} parent=11 // pred_check
          %p224 = pneg %p143
        $region26: #{tpu_custom_call.1} parent=11 // pred_check_branch
          %226 = sbr.rel (%p224) target = $region28
        $region27: #{tpu_custom_call.1} parent=11 // pred_region
          %s228 = ssub.s32 2048, 2048
          %229 = vsyncadd [#allocation7], %s228
          %s230 = sshll.u32 [#allocation8], 4
          %s231 = int_to_ptr.vmem [resolvable:$true] %s230
          %236 = dma.hbm_to_vmem [thread:$0]  %s4, 2048, %s231, [#allocation7], 128, 128, 8
        $region28: #{tpu_custom_call.1} parent=11 // pred_fallthru
          _
        // Predicated region
        $region29: #{tpu_custom_call.1} parent=11 // pred_check
          %p237 = pneg %p164
        $region30: #{tpu_custom_call.1} parent=11 // pred_check_branch
          %239 = sbr.rel (%p237) target = $region32
        $region31: #{tpu_custom_call.1} parent=11 // pred_region
          _
        $region32: #{tpu_custom_call.1} parent=11 // pred_fallthru
          _
      $region12: #{tpu_custom_call.1} parent=5 // pred_fallthru
        _
      %p240 = scmp.lt.s32.totalorder %s19, 2
      // Predicated region
      $region33: #{tpu_custom_call.1} parent=5 // pred_check
        %p241 = pneg %p240
      $region34: #{tpu_custom_call.1} parent=5 // pred_check_branch
        %243 = sbr.rel (%p241) target = $region36
      $region35: #{tpu_custom_call.1} parent=5 // pred_region
        // Predicated region
        $region37: #{tpu_custom_call.1} parent=35 // pred_check
          %p244 = pneg %p53
        $region38: #{tpu_custom_call.1} parent=35 // pred_check_branch
          %246 = sbr.rel (%p244) target = $region40
        $region39: #{tpu_custom_call.1} parent=35 // pred_region
          %s247 = sand.u32 %s43, 1
          %s248 = scalar_lea.sflag [#allocation4], %s247
          %s249 = sand.u32 %s43, 1
          %s250 = smul.addr %s249, 64
          %s251 = scalar_lea.vmem [#allocation3], %s250
          %s252 = smul.u32 8, %s27
          %s254 = ssub.s32 1024, 1024
          %255 = vsyncadd %s248, %s254
          %s256 = smul.addr %s252, 2
          %s257 = smul.addr %s26, 16
          %s258 = sadd.s32 %s256, %s257
          %s259 = smul.addr %s258, 64
          %s260 = scalar_lea.hbm %s0, %s259
          %s261 = sshll.u32 %s251, 4
          %s262 = int_to_ptr.vmem [resolvable:$true] %s261
          %267 = dma.hbm_to_vmem [thread:$0]  %s260, 1024, %s262, %s248, 128, 128, 8
        $region40: #{tpu_custom_call.1} parent=35 // pred_fallthru
          _
      $region36: #{tpu_custom_call.1} parent=5 // pred_fallthru
        _
      %p268 = scmp.le.s32.totalorder 1, %s19
      %p269 = scmp.lt.s32.totalorder %s19, 3
      %p270 = pnand %p268, %p269
      %p271 = pneg %p270
      // Predicated region
      $region41: #{tpu_custom_call.1} parent=5 // pred_check
        _
      $region42: #{tpu_custom_call.1} parent=5 // pred_check_branch
        %273 = sbr.rel (%p270) target = $region44
      $region43: #{tpu_custom_call.1} parent=5 // pred_region
        %s274 = ssub.s32 %s19, 1
        %s275 = sand.u32 %s46, 1
        %s276 = scalar_lea.sflag [#allocation4], %s275
        %s277 = sand.u32 %s46, 1
        %s278 = smul.addr %s277, 64
        %s279 = scalar_lea.vmem [#allocation3], %s278
        // Predicated region
        $region45: #{tpu_custom_call.1} parent=43 // pred_check
          %p280 = pneg %p59
        $region46: #{tpu_custom_call.1} parent=43 // pred_check_branch
          %282 = sbr.rel (%p280) target = $region48
        $region47: #{tpu_custom_call.1} parent=43 // pred_region
          %283 = dma.done %s276, 1024
        $region48: #{tpu_custom_call.1} parent=43 // pred_fallthru
          _
        // Predicated region
        $region49: #{tpu_custom_call.1} parent=43 // pred_check
          %p284 = pneg %p80
        $region50: #{tpu_custom_call.1} parent=43 // pred_check_branch
          %286 = sbr.rel (%p284) target = $region52
        $region51: #{tpu_custom_call.1} parent=43 // pred_region
          %287 = dma.done [#allocation7], 1216
        $region52: #{tpu_custom_call.1} parent=43 // pred_fallthru
          _
        // Predicated region
        $region53: #{tpu_custom_call.1} parent=43 // pred_check
          %p288 = pneg %p143
        $region54: #{tpu_custom_call.1} parent=43 // pred_check_branch
          %290 = sbr.rel (%p288) target = $region56
        $region55: #{tpu_custom_call.1} parent=43 // pred_region
          %291 = dma.done [#allocation7], 2048
        $region56: #{tpu_custom_call.1} parent=43 // pred_fallthru
          _
        %s292 = sand.u32 %s46, 1
        %s293 = scalar_lea.sflag [#allocation4], %s292
        %s294 = sand.u32 %s46, 1
        %s295 = smul.addr %s294, 64
        %s296 = scalar_lea.vmem [#allocation3], %s295
        %p297 = pneg %p59
        %p298 = pneg %p56
        %p299 = pneg %p80
        %p300 = pneg %p77
        %p301 = pneg %p101
        %p302 = pneg %p98
        %p303 = pneg %p122
        %p304 = pneg %p119
        %p305 = pneg %p143
        %p306 = pneg %p140
        %p307 = pneg %p164
        %p308 = pneg %p161
        %p309 = pneg %p190
        %p310 = pneg %p187
        %s311 = sand.u32 %s177, 1
        %s312 = scalar_lea.sflag [#allocation5], %s311
        %s313 = sand.u32 %s177, 1
        %s314 = smul.addr %s313, 8
        %s315 = scalar_lea.vmem [#allocation9], %s314
        %s316 = smul.u32 8, %s29
        %p318 = scmp.eq.s32.totalorder %s29, 0
        // Predicated region
        $region57: #{tpu_custom_call.1} parent=43 // pred_check
          %p319 = pneg %p318
        $region58: #{tpu_custom_call.1} parent=43 // pred_check_branch
          %321 = sbr.rel (%p319) target = $region60
        $region59: #{tpu_custom_call.1} parent=43 // pred_region
          %322 = vst [vmem:[#allocation2] sm:$0x1] 0.0
        $region60: #{tpu_custom_call.1} parent=43 // pred_fallthru
          _
        %v323 = vld [vmem:[%s279] sm:$0xff]
        %v324 = vld [vmem:[%s279 + $0x8] sm:$0xff]
        %v325 = vld [vmem:[%s279 + $0x10] sm:$0xff]
        %v326 = vld [vmem:[%s279 + $0x18] sm:$0xff]
        %v327 = vld [vmem:[%s279 + $0x20] sm:$0xff]
        %v328 = vld [vmem:[%s279 + $0x28] sm:$0xff]
        %v329 = vld [vmem:[%s279 + $0x30] sm:$0xff]
        %v330 = vld [vmem:[%s279 + $0x38] sm:$0xff]
        %v331 = vld [vmem:[#allocation6] sm:$0xf]
        %v332 = vld [vmem:[#allocation6 + $0x4] sm:$0xf]
        %v333 = vld [vmem:[#allocation6 + $0x8] sm:$0xf]
        %v334 = vld [vmem:[#allocation6 + $0xc] sm:$0xf]
        %v335 = vld [vmem:[#allocation6 + $0x10] sm:$0xf]
        %v336 = vld [vmem:[#allocation6 + $0x14] sm:$0xf]
        %v337 = vld [vmem:[#allocation6 + $0x18] sm:$0xf]
        %v338 = vld [vmem:[#allocation6 + $0x1c] sm:$0xf]
        %v339 = vld [vmem:[#allocation6 + $0x20] sm:$0xf]
        %v340 = vld [vmem:[#allocation6 + $0x24] sm:$0xf]
        %v341 = vld [vmem:[#allocation6 + $0x28] sm:$0xf]
        %v342 = vld [vmem:[#allocation6 + $0x2c] sm:$0xf]
        %v343 = vld [vmem:[#allocation6 + $0x30] sm:$0xf]
        %v344 = vld [vmem:[#allocation6 + $0x34] sm:$0xf]
        %v345 = vld [vmem:[#allocation6 + $0x38] sm:$0xf]
        %v346 = vld [vmem:[#allocation6 + $0x3c] sm:$0xf]
        %v347 = vld [vmem:[#allocation6 + $0x40] sm:$0xf]
        %v348 = vld [vmem:[#allocation6 + $0x44] sm:$0xf]
        %v349 = vld [vmem:[#allocation6 + $0x48] sm:$0x3]
        %v358 = vunpack.c.l.b16 %v323
        %v359 = vunpack.c.h.b16 %v323
        %v360 = vunpack.c.l.b16 %v324
        %v361 = vunpack.c.h.b16 %v324
        %v362 = vunpack.c.l.b16 %v325
        %v363 = vunpack.c.h.b16 %v325
        %v364 = vunpack.c.l.b16 %v326
        %v365 = vunpack.c.h.b16 %v326
        %v366 = vunpack.c.l.b16 %v327
        %v367 = vunpack.c.h.b16 %v327
        %v368 = vunpack.c.l.b16 %v328
        %v369 = vunpack.c.h.b16 %v328
        %v370 = vunpack.c.l.b16 %v329
        %v371 = vunpack.c.h.b16 %v329
        %v372 = vunpack.c.l.b16 %v330
        %v373 = vunpack.c.h.b16 %v330
        %v374 = vpack.c.b16 %v360, %v358
        %v375 = vpack.c.b16 %v361, %v359
        %v376 = vpack.c.b16 %v364, %v362
        %v377 = vpack.c.b16 %v365, %v363
        %v378 = vpack.c.b16 %v368, %v366
        %v379 = vpack.c.b16 %v369, %v367
        %v380 = vpack.c.b16 %v372, %v370
        %v381 = vpack.c.b16 %v373, %v371
        %v405 = vunpack.c.l.b16 %v331
        %v406 = vunpack.c.l.b16 %v332
        %v407 = vunpack.c.l.b16 %v333
        %v408 = vunpack.c.l.b16 %v334
        %v409 = vunpack.c.l.b16 %v335
        %v410 = vunpack.c.l.b16 %v336
        %v411 = vunpack.c.l.b16 %v337
        %v412 = vunpack.c.l.b16 %v338
        %v413 = vunpack.c.l.b16 %v339
        %v414 = vunpack.c.l.b16 %v340
        %v415 = vunpack.c.l.b16 %v341
        %v416 = vunpack.c.l.b16 %v342
        %v417 = vunpack.c.l.b16 %v343
        %v418 = vunpack.c.l.b16 %v344
        %v419 = vunpack.c.l.b16 %v345
        %v420 = vunpack.c.l.b16 %v346
        %v421 = vunpack.c.l.b16 %v347
        %v422 = vunpack.c.l.b16 %v348
        %v423 = vunpack.c.l.b16 %v349
        %v424 = vpack.c.b16 %v406, %v405
        %v425 = vpack.c.b16 %v408, %v407
        %v426 = vpack.c.b16 %v410, %v409
        %v427 = vpack.c.b16 %v412, %v411
        %v428 = vpack.c.b16 %v414, %v413
        %v429 = vpack.c.b16 %v416, %v415
        %v430 = vpack.c.b16 %v418, %v417
        %v431 = vpack.c.b16 %v420, %v419
        %v432 = vpack.c.b16 %v422, %v421
        %v433 = vpack.c.b16 %v423, %v423
        %vm443 = vcmask 154624
        %v445 = vsel %vm443, %v375, 0
        %v448 = vsel %vm443, %v377, 0
        %v451 = vsel %vm443, %v379, 0
        %v454 = vsel %vm443, %v381, 0
        %vm456 = vcmask 1040384
        %vm457 = vcmask 1041408
        %v458 = vsel %vm456, 4294967295, 65535
        %v459 = vsel %vm457, %v458, 0
        %v461 = vand.u32 %v433, %v459
        %463 = vmatprep.subr.bf16.mxu0 0
        %464 = vmatpush1.bf16.msra.mxu0 %v424
        %465 = vmatprep.subr.bf16.mxu0 0
        %466 = vmatpush1.bf16.msra.mxu0 %v425
        %467 = vmatprep.subr.bf16.mxu0 0
        %468 = vmatpush1.bf16.msra.mxu0 %v426
        %469 = vmatprep.subr.bf16.mxu0 0
        %470 = vmatpush1.bf16.msra.mxu0 %v427
        %471 = vmatprep.subr.bf16.mxu0 0
        %472 = vmatpush1.bf16.msra.mxu0 %v428
        %473 = vmatprep.subr.bf16.mxu0 0
        %474 = vmatpush1.bf16.msra.mxu0 %v429
        %475 = vmatprep.subr.bf16.mxu0 0
        %476 = vmatpush1.bf16.msra.mxu0 %v430
        %477 = vmatprep.subr.bf16.mxu0 0
        %478 = vmatpush1.bf16.msra.mxu0 %v431
        %479 = vmatprep.subr.bf16.mxu0 0
        %480 = vmatpush1.bf16.msra.mxu0 %v432
        %481 = vmatprep.subr.bf16.mxu0 0
        %482 = vmatpush1.bf16.msra.mxu0 %v461
        %483 = vmatprep.subr.bf16.mxu0 0
        %484 = vmatpush1.bf16.msra.mxu0 0
        %485 = vmatprep.subr.bf16.mxu0 0
        %486 = vmatpush1.bf16.msra.mxu0 0
        %487 = vmatprep.subr.bf16.mxu0 0
        %488 = vmatpush1.bf16.msra.mxu0 0
        %489 = vmatprep.subr.bf16.mxu0 0
        %490 = vmatpush1.bf16.msra.mxu0 0
        %491 = vmatprep.subr.bf16.mxu0 0
        %492 = vmatpush1.bf16.msra.mxu0 0
        %493 = vmatprep.subr.bf16.mxu0 0
        %494 = vmatpush1.bf16.msra.mxu0 0
        %495 = vmatprep.mubr.bf16.mxu0 %v445
        %496 = vmatmul.mubr.bf16.gmra.mrb[0].mxu0 %v374
        %v497 = vpop.f32.mrb[0].mxu0
        %v498 = vadd.f32 0.0, %v497
        %v499 = vpop.f32.mrb[0].mxu0
        %v500 = vpop.f32.mrb[0].mxu0
        %v501 = vadd.f32 0.0, %v500
        %v502 = vpop.f32.mrb[0].mxu0
        %503 = vmatprep.mubr.bf16.mxu0 %v448
        %504 = vmatmul.mubr.bf16.gmra.mrb[0].mxu0 %v376
        %v505 = vpop.f32.mrb[0].mxu0
        %v506 = vadd.f32 0.0, %v505
        %v507 = vpop.f32.mrb[0].mxu0
        %v508 = vpop.f32.mrb[0].mxu0
        %v509 = vadd.f32 0.0, %v508
        %v510 = vpop.f32.mrb[0].mxu0
        %511 = vmatprep.mubr.bf16.mxu0 %v451
        %512 = vmatmul.mubr.bf16.gmra.mrb[0].mxu0 %v378
        %v513 = vpop.f32.mrb[0].mxu0
        %v514 = vadd.f32 0.0, %v513
        %v515 = vpop.f32.mrb[0].mxu0
        %v516 = vpop.f32.mrb[0].mxu0
        %v517 = vadd.f32 0.0, %v516
        %v518 = vpop.f32.mrb[0].mxu0
        %519 = vmatprep.mubr.bf16.mxu0 %v454
        %520 = vmatmul.mubr.bf16.gmra.mrb[0].mxu0 %v380
        %v521 = vpop.f32.mrb[0].mxu0
        %v522 = vadd.f32 0.0, %v521
        %v523 = vpop.f32.mrb[0].mxu0
        %v524 = vpop.f32.mrb[0].mxu0
        %v525 = vadd.f32 0.0, %v524
        %v526 = vpop.f32.mrb[0].mxu0
        %527 = vdwg.mxu0
        %v528 = vld [vmem:[%s2] sm:$0x1]
        %v530 = vlaneseq
        %v531 = vshrl.u32 %v530, 7
        %v532 = vsub.s32 0, %v531
        %v533 = vrot.slane %v528, %v532
        %v535 = vmul.f32 %v498, %v533
        %v536 = vmul.f32 %v501, %v533
        %v537 = vmul.f32 %v506, %v533
        %v538 = vmul.f32 %v509, %v533
        %v539 = vmul.f32 %v514, %v533
        %v540 = vmul.f32 %v517, %v533
        %v541 = vmul.f32 %v522, %v533
        %v542 = vmul.f32 %v525, %v533
        %v543 = vld [vmem:[%s3] sm:$0x1]
        %v545 = vlaneseq
        %v546 = vshrl.u32 %v545, 7
        %v547 = vsub.s32 0, %v546
        %v548 = vrot.slane %v543, %v547
        %v550 = vadd.f32 %v535, %v548
        %v551 = vadd.f32 %v536, %v548
        %v552 = vadd.f32 %v537, %v548
        %v553 = vadd.f32 %v538, %v548
        %v554 = vadd.f32 %v539, %v548
        %v555 = vadd.f32 %v540, %v548
        %v556 = vadd.f32 %v541, %v548
        %v557 = vadd.f32 %v542, %v548
        %v558 = vmax.f32 %v550, 0.0
        %v559 = vmax.f32 %v551, 0.0
        %v560 = vmax.f32 %v552, 0.0
        %v561 = vmax.f32 %v553, 0.0
        %v562 = vmax.f32 %v554, 0.0
        %v563 = vmax.f32 %v555, 0.0
        %v564 = vmax.f32 %v556, 0.0
        %v565 = vmax.f32 %v557, 0.0
        %v566 = vld [vmem:[#allocation2] sm:$0x1]
        %v567 = vadd.f32 %v558, %v559
        %v568 = vadd.f32 %v567, %v560
        %v569 = vadd.f32 %v568, %v561
        %v570 = vadd.f32 %v569, %v562
        %v571 = vadd.f32 %v570, %v563
        %v572 = vadd.f32 %v571, %v564
        %v573 = vadd.f32 %v572, %v565
        %v574 = vrot.slane %v573, 4
        %v575 = vadd.f32 %v573, %v574
        %v576 = vrot.slane %v575, 2
        %v577 = vadd.f32 %v575, %v576
        %v578 = vrot.slane %v577, 1
        %v579 = vadd.f32 %v577, %v578
        %v580 = vadd.f32 %v566, %v579
        %581 = vst [vmem:[#allocation2] sm:$0x1] %v580
        // Predicated region
        $region61: #{tpu_custom_call.1} parent=43 // pred_check
          %p582 = pneg %p318
        $region62: #{tpu_custom_call.1} parent=43 // pred_check_branch
          %584 = sbr.rel (%p582) target = $region64
        $region63: #{tpu_custom_call.1} parent=43 // pred_region
          %v585 = vld [vmem:[#allocation2] sm:$0x1]
          %v586 = vmul.f32 %v585, 0.015625
          %v587 = vld [vmem:[#allocation8] sm:$0xff]
          %v588 = vld [vmem:[#allocation8 + $0x8] sm:$0xff]
          %v589 = vld [vmem:[#allocation8 + $0x10] sm:$0xff]
          %v590 = vld [vmem:[#allocation8 + $0x18] sm:$0xff]
          %v591 = vld [vmem:[#allocation8 + $0x20] sm:$0xff]
          %v592 = vld [vmem:[#allocation8 + $0x28] sm:$0xff]
          %v593 = vld [vmem:[#allocation8 + $0x30] sm:$0xff]
          %v594 = vld [vmem:[#allocation8 + $0x38] sm:$0xff]
          %v595 = vld [vmem:[#allocation8 + $0x40] sm:$0xff]
          %v596 = vld [vmem:[#allocation8 + $0x48] sm:$0xff]
          %v597 = vld [vmem:[#allocation8 + $0x50] sm:$0xff]
          %v598 = vld [vmem:[#allocation8 + $0x58] sm:$0xff]
          %v599 = vld [vmem:[#allocation8 + $0x60] sm:$0xff]
          %v600 = vld [vmem:[#allocation8 + $0x68] sm:$0xff]
          %v601 = vld [vmem:[#allocation8 + $0x70] sm:$0xff]
          %v602 = vld [vmem:[#allocation8 + $0x78] sm:$0xff]
          %v603 = vld [vmem:[%s5] sm:$0x1]
          %604 = vmatprep.subr.mxu0 0.0
          %v605 = vand.u32 %v587, 4294901760
          %606 = vmatpush1.msra.mxu0 %v605
          %607 = vmatprep.subr.mxu0 0.0
          %v608 = vand.u32 %v588, 4294901760
          %609 = vmatpush1.msra.mxu0 %v608
          %610 = vmatprep.subr.mxu0 0.0
          %v611 = vand.u32 %v589, 4294901760
          %612 = vmatpush1.msra.mxu0 %v611
          %613 = vmatprep.subr.mxu0 0.0
          %v614 = vand.u32 %v590, 4294901760
          %615 = vmatpush1.msra.mxu0 %v614
          %616 = vmatprep.subr.mxu0 0.0
          %v617 = vand.u32 %v591, 4294901760
          %618 = vmatpush1.msra.mxu0 %v617
          %619 = vmatprep.subr.mxu0 0.0
          %v620 = vand.u32 %v592, 4294901760
          %621 = vmatpush1.msra.mxu0 %v620
          %622 = vmatprep.subr.mxu0 0.0
          %v623 = vand.u32 %v593, 4294901760
          %624 = vmatpush1.msra.mxu0 %v623
          %625 = vmatprep.subr.mxu0 0.0
          %v626 = vand.u32 %v594, 4294901760
          %627 = vmatpush1.msra.mxu0 %v626
          %628 = vmatprep.subr.mxu0 0.0
          %v629 = vand.u32 %v595, 4294901760
          %630 = vmatpush1.msra.mxu0 %v629
          %631 = vmatprep.subr.mxu0 0.0
          %v632 = vand.u32 %v596, 4294901760
          %633 = vmatpush1.msra.mxu0 %v632
          %634 = vmatprep.subr.mxu0 0.0
          %v635 = vand.u32 %v597, 4294901760
          %636 = vmatpush1.msra.mxu0 %v635
          %637 = vmatprep.subr.mxu0 0.0
          %v638 = vand.u32 %v598, 4294901760
          %639 = vmatpush1.msra.mxu0 %v638
          %640 = vmatprep.subr.mxu0 0.0
          %v641 = vand.u32 %v599, 4294901760
          %642 = vmatpush1.msra.mxu0 %v641
          %643 = vmatprep.subr.mxu0 0.0
          %v644 = vand.u32 %v600, 4294901760
          %645 = vmatpush1.msra.mxu0 %v644
          %646 = vmatprep.subr.mxu0 0.0
          %v647 = vand.u32 %v601, 4294901760
          %648 = vmatpush1.msra.mxu0 %v647
          %649 = vmatprep.subr.mxu0 0.0
          %v650 = vand.u32 %v602, 4294901760
          %651 = vmatpush1.msra.mxu0 %v650
          %652 = vmatprep.subr.mxu0 0.0
          %653 = vmatpush1.msra.mxu0 0.0
          %654 = vmatprep.subr.mxu0 0.0
          %655 = vmatpush1.msra.mxu0 0.0
          %656 = vmatprep.subr.mxu0 0.0
          %657 = vmatpush1.msra.mxu0 0.0
          %658 = vmatprep.subr.mxu0 0.0
          %659 = vmatpush1.msra.mxu0 0.0
          %660 = vmatprep.subr.mxu0 0.0
          %661 = vmatpush1.msra.mxu0 0.0
          %662 = vmatprep.subr.mxu0 0.0
          %663 = vmatpush1.msra.mxu0 0.0
          %664 = vmatprep.subr.mxu0 0.0
          %665 = vmatpush1.msra.mxu0 0.0
          %666 = vmatprep.subr.mxu0 0.0
          %667 = vmatpush1.msra.mxu0 0.0
          %668 = vmatprep.subr.mxu0 0.0
          %669 = vmatpush1.msra.mxu0 0.0
          %670 = vmatprep.subr.mxu0 0.0
          %671 = vmatpush1.msra.mxu0 0.0
          %672 = vmatprep.subr.mxu0 0.0
          %673 = vmatpush1.msra.mxu0 0.0
          %674 = vmatprep.subr.mxu0 0.0
          %675 = vmatpush1.msra.mxu0 0.0
          %676 = vmatprep.subr.mxu0 0.0
          %677 = vmatpush1.msra.mxu0 0.0
          %678 = vmatprep.subr.mxu0 0.0
          %679 = vmatpush1.msra.mxu0 0.0
          %680 = vmatprep.subr.mxu0 0.0
          %681 = vmatpush1.msra.mxu0 0.0
          %682 = vmatprep.subr.mxu0 0.0
          %683 = vmatpush1.msra.mxu0 0.0
          %684 = vmatprep.mubr.f32.mxu0 0.0
          %v685 = vand.u32 %v586, 4294901760
          %v686 = vsub.f32 %v586, %v685
          %v687 = vand.u32 %v686, 4294901760
          %v688 = vsub.f32 %v686, %v687
          %v689 = vand.u32 %v688, 4294901760
          %690 = vmatmul.mubr.f32.gmra.mrb[0].mxu0 %v689
          %v691 = vpop.f32.mrb[0].mxu0
          %v692 = vadd.f32 %v603, %v691
          %v693 = vpop.f32.mrb[0].mxu0
          %694 = vdwg.mxu0
          %695 = vmatprep.subr.mxu0 0.0
          %v696 = vand.u32 %v587, 4294901760
          %v697 = vsub.f32 %v587, %v696
          %v698 = vand.u32 %v697, 4294901760
          %v699 = vsub.f32 %v697, %v698
          %v700 = vand.u32 %v699, 4294901760
          %701 = vmatpush1.msra.mxu0 %v700
          %702 = vmatprep.subr.mxu0 0.0
          %v703 = vand.u32 %v588, 4294901760
          %v704 = vsub.f32 %v588, %v703
          %v705 = vand.u32 %v704, 4294901760
          %v706 = vsub.f32 %v704, %v705
          %v707 = vand.u32 %v706, 4294901760
          %708 = vmatpush1.msra.mxu0 %v707
          %709 = vmatprep.subr.mxu0 0.0
          %v710 = vand.u32 %v589, 4294901760
          %v711 = vsub.f32 %v589, %v710
          %v712 = vand.u32 %v711, 4294901760
          %v713 = vsub.f32 %v711, %v712
          %v714 = vand.u32 %v713, 4294901760
          %715 = vmatpush1.msra.mxu0 %v714
          %716 = vmatprep.subr.mxu0 0.0
          %v717 = vand.u32 %v590, 4294901760
          %v718 = vsub.f32 %v590, %v717
          %v719 = vand.u32 %v718, 4294901760
          %v720 = vsub.f32 %v718, %v719
          %v721 = vand.u32 %v720, 4294901760
          %722 = vmatpush1.msra.mxu0 %v721
          %723 = vmatprep.subr.mxu0 0.0
          %v724 = vand.u32 %v591, 4294901760
          %v725 = vsub.f32 %v591, %v724
          %v726 = vand.u32 %v725, 4294901760
          %v727 = vsub.f32 %v725, %v726
          %v728 = vand.u32 %v727, 4294901760
          %729 = vmatpush1.msra.mxu0 %v728
          %730 = vmatprep.subr.mxu0 0.0
          %v731 = vand.u32 %v592, 4294901760
          %v732 = vsub.f32 %v592, %v731
          %v733 = vand.u32 %v732, 4294901760
          %v734 = vsub.f32 %v732, %v733
          %v735 = vand.u32 %v734, 4294901760
          %736 = vmatpush1.msra.mxu0 %v735
          %737 = vmatprep.subr.mxu0 0.0
          %v738 = vand.u32 %v593, 4294901760
          %v739 = vsub.f32 %v593, %v738
          %v740 = vand.u32 %v739, 4294901760
          %v741 = vsub.f32 %v739, %v740
          %v742 = vand.u32 %v741, 4294901760
          %743 = vmatpush1.msra.mxu0 %v742
          %744 = vmatprep.subr.mxu0 0.0
          %v745 = vand.u32 %v594, 4294901760
          %v746 = vsub.f32 %v594, %v745
          %v747 = vand.u32 %v746, 4294901760
          %v748 = vsub.f32 %v746, %v747
          %v749 = vand.u32 %v748, 4294901760
          %750 = vmatpush1.msra.mxu0 %v749
          %751 = vmatprep.subr.mxu0 0.0
          %v752 = vand.u32 %v595, 4294901760
          %v753 = vsub.f32 %v595, %v752
          %v754 = vand.u32 %v753, 4294901760
          %v755 = vsub.f32 %v753, %v754
          %v756 = vand.u32 %v755, 4294901760
          %757 = vmatpush1.msra.mxu0 %v756
          %758 = vmatprep.subr.mxu0 0.0
          %v759 = vand.u32 %v596, 4294901760
          %v760 = vsub.f32 %v596, %v759
          %v761 = vand.u32 %v760, 4294901760
          %v762 = vsub.f32 %v760, %v761
          %v763 = vand.u32 %v762, 4294901760
          %764 = vmatpush1.msra.mxu0 %v763
          %765 = vmatprep.subr.mxu0 0.0
          %v766 = vand.u32 %v597, 4294901760
          %v767 = vsub.f32 %v597, %v766
          %v768 = vand.u32 %v767, 4294901760
          %v769 = vsub.f32 %v767, %v768
          %v770 = vand.u32 %v769, 4294901760
          %771 = vmatpush1.msra.mxu0 %v770
          %772 = vmatprep.subr.mxu0 0.0
          %v773 = vand.u32 %v598, 4294901760
          %v774 = vsub.f32 %v598, %v773
          %v775 = vand.u32 %v774, 4294901760
          %v776 = vsub.f32 %v774, %v775
          %v777 = vand.u32 %v776, 4294901760
          %778 = vmatpush1.msra.mxu0 %v777
          %779 = vmatprep.subr.mxu0 0.0
          %v780 = vand.u32 %v599, 4294901760
          %v781 = vsub.f32 %v599, %v780
          %v782 = vand.u32 %v781, 4294901760
          %v783 = vsub.f32 %v781, %v782
          %v784 = vand.u32 %v783, 4294901760
          %785 = vmatpush1.msra.mxu0 %v784
          %786 = vmatprep.subr.mxu0 0.0
          %v787 = vand.u32 %v600, 4294901760
          %v788 = vsub.f32 %v600, %v787
          %v789 = vand.u32 %v788, 4294901760
          %v790 = vsub.f32 %v788, %v789
          %v791 = vand.u32 %v790, 4294901760
          %792 = vmatpush1.msra.mxu0 %v791
          %793 = vmatprep.subr.mxu0 0.0
          %v794 = vand.u32 %v601, 4294901760
          %v795 = vsub.f32 %v601, %v794
          %v796 = vand.u32 %v795, 4294901760
          %v797 = vsub.f32 %v795, %v796
          %v798 = vand.u32 %v797, 4294901760
          %799 = vmatpush1.msra.mxu0 %v798
          %800 = vmatprep.subr.mxu0 0.0
          %v801 = vand.u32 %v602, 4294901760
          %v802 = vsub.f32 %v602, %v801
          %v803 = vand.u32 %v802, 4294901760
          %v804 = vsub.f32 %v802, %v803
          %v805 = vand.u32 %v804, 4294901760
          %806 = vmatpush1.msra.mxu0 %v805
          %807 = vmatprep.subr.mxu0 0.0
          %808 = vmatpush1.msra.mxu0 0.0
          %809 = vmatprep.subr.mxu0 0.0
          %810 = vmatpush1.msra.mxu0 0.0
          %811 = vmatprep.subr.mxu0 0.0
          %812 = vmatpush1.msra.mxu0 0.0
          %813 = vmatprep.subr.mxu0 0.0
          %814 = vmatpush1.msra.mxu0 0.0
          %815 = vmatprep.subr.mxu0 0.0
          %816 = vmatpush1.msra.mxu0 0.0
          %817 = vmatprep.subr.mxu0 0.0
          %818 = vmatpush1.msra.mxu0 0.0
          %819 = vmatprep.subr.mxu0 0.0
          %820 = vmatpush1.msra.mxu0 0.0
          %821 = vmatprep.subr.mxu0 0.0
          %822 = vmatpush1.msra.mxu0 0.0
          %823 = vmatprep.subr.mxu0 0.0
          %824 = vmatpush1.msra.mxu0 0.0
          %825 = vmatprep.subr.mxu0 0.0
          %826 = vmatpush1.msra.mxu0 0.0
          %827 = vmatprep.subr.mxu0 0.0
          %828 = vmatpush1.msra.mxu0 0.0
          %829 = vmatprep.subr.mxu0 0.0
          %830 = vmatpush1.msra.mxu0 0.0
          %831 = vmatprep.subr.mxu0 0.0
          %832 = vmatpush1.msra.mxu0 0.0
          %833 = vmatprep.subr.mxu0 0.0
          %834 = vmatpush1.msra.mxu0 0.0
          %835 = vmatprep.subr.mxu0 0.0
          %836 = vmatpush1.msra.mxu0 0.0
          %837 = vmatprep.subr.mxu0 0.0
          %838 = vmatpush1.msra.mxu0 0.0
          %839 = vmatprep.mubr.f32.mxu0 0.0
          %v840 = vand.u32 %v586, 4294901760
          %841 = vmatmul.mubr.f32.gmra.mrb[0].mxu0 %v840
          %v842 = vpop.f32.mrb[0].mxu0
          %v843 = vadd.f32 %v692, %v842
          %v844 = vpop.f32.mrb[0].mxu0
          %845 = vdwg.mxu0
          %846 = vmatprep.subr.mxu0 0.0
          %v847 = vand.u32 %v587, 4294901760
          %v848 = vsub.f32 %v587, %v847
          %849 = vmatpush1.msra.mxu0 %v848
          %850 = vmatprep.subr.mxu0 0.0
          %v851 = vand.u32 %v588, 4294901760
          %v852 = vsub.f32 %v588, %v851
          %853 = vmatpush1.msra.mxu0 %v852
          %854 = vmatprep.subr.mxu0 0.0
          %v855 = vand.u32 %v589, 4294901760
          %v856 = vsub.f32 %v589, %v855
          %857 = vmatpush1.msra.mxu0 %v856
          %858 = vmatprep.subr.mxu0 0.0
          %v859 = vand.u32 %v590, 4294901760
          %v860 = vsub.f32 %v590, %v859
          %861 = vmatpush1.msra.mxu0 %v860
          %862 = vmatprep.subr.mxu0 0.0
          %v863 = vand.u32 %v591, 4294901760
          %v864 = vsub.f32 %v591, %v863
          %865 = vmatpush1.msra.mxu0 %v864
          %866 = vmatprep.subr.mxu0 0.0
          %v867 = vand.u32 %v592, 4294901760
          %v868 = vsub.f32 %v592, %v867
          %869 = vmatpush1.msra.mxu0 %v868
          %870 = vmatprep.subr.mxu0 0.0
          %v871 = vand.u32 %v593, 4294901760
          %v872 = vsub.f32 %v593, %v871
          %873 = vmatpush1.msra.mxu0 %v872
          %874 = vmatprep.subr.mxu0 0.0
          %v875 = vand.u32 %v594, 4294901760
          %v876 = vsub.f32 %v594, %v875
          %877 = vmatpush1.msra.mxu0 %v876
          %878 = vmatprep.subr.mxu0 0.0
          %v879 = vand.u32 %v595, 4294901760
          %v880 = vsub.f32 %v595, %v879
          %881 = vmatpush1.msra.mxu0 %v880
          %882 = vmatprep.subr.mxu0 0.0
          %v883 = vand.u32 %v596, 4294901760
          %v884 = vsub.f32 %v596, %v883
          %885 = vmatpush1.msra.mxu0 %v884
          %886 = vmatprep.subr.mxu0 0.0
          %v887 = vand.u32 %v597, 4294901760
          %v888 = vsub.f32 %v597, %v887
          %889 = vmatpush1.msra.mxu0 %v888
          %890 = vmatprep.subr.mxu0 0.0
          %v891 = vand.u32 %v598, 4294901760
          %v892 = vsub.f32 %v598, %v891
          %893 = vmatpush1.msra.mxu0 %v892
          %894 = vmatprep.subr.mxu0 0.0
          %v895 = vand.u32 %v599, 4294901760
          %v896 = vsub.f32 %v599, %v895
          %897 = vmatpush1.msra.mxu0 %v896
          %898 = vmatprep.subr.mxu0 0.0
          %v899 = vand.u32 %v600, 4294901760
          %v900 = vsub.f32 %v600, %v899
          %901 = vmatpush1.msra.mxu0 %v900
          %902 = vmatprep.subr.mxu0 0.0
          %v903 = vand.u32 %v601, 4294901760
          %v904 = vsub.f32 %v601, %v903
          %905 = vmatpush1.msra.mxu0 %v904
          %906 = vmatprep.subr.mxu0 0.0
          %v907 = vand.u32 %v602, 4294901760
          %v908 = vsub.f32 %v602, %v907
          %909 = vmatpush1.msra.mxu0 %v908
          %910 = vmatprep.subr.mxu0 0.0
          %911 = vmatpush1.msra.mxu0 0.0
          %912 = vmatprep.subr.mxu0 0.0
          %913 = vmatpush1.msra.mxu0 0.0
          %914 = vmatprep.subr.mxu0 0.0
          %915 = vmatpush1.msra.mxu0 0.0
          %916 = vmatprep.subr.mxu0 0.0
          %917 = vmatpush1.msra.mxu0 0.0
          %918 = vmatprep.subr.mxu0 0.0
          %919 = vmatpush1.msra.mxu0 0.0
          %920 = vmatprep.subr.mxu0 0.0
          %921 = vmatpush1.msra.mxu0 0.0
          %922 = vmatprep.subr.mxu0 0.0
          %923 = vmatpush1.msra.mxu0 0.0
          %924 = vmatprep.subr.mxu0 0.0
          %925 = vmatpush1.msra.mxu0 0.0
          %926 = vmatprep.subr.mxu0 0.0
          %927 = vmatpush1.msra.mxu0 0.0
          %928 = vmatprep.subr.mxu0 0.0
          %929 = vmatpush1.msra.mxu0 0.0
          %930 = vmatprep.subr.mxu0 0.0
          %931 = vmatpush1.msra.mxu0 0.0
          %932 = vmatprep.subr.mxu0 0.0
          %933 = vmatpush1.msra.mxu0 0.0
          %934 = vmatprep.subr.mxu0 0.0
          %935 = vmatpush1.msra.mxu0 0.0
          %936 = vmatprep.subr.mxu0 0.0
          %937 = vmatpush1.msra.mxu0 0.0
          %938 = vmatprep.subr.mxu0 0.0
          %939 = vmatpush1.msra.mxu0 0.0
          %940 = vmatprep.subr.mxu0 0.0
          %941 = vmatpush1.msra.mxu0 0.0
          %942 = vmatprep.mubr.f32.mxu0 0.0
          %v943 = vand.u32 %v586, 4294901760
          %v944 = vsub.f32 %v586, %v943
          %945 = vmatmul.mubr.f32.gmra.mrb[0].mxu0 %v944
          %v946 = vpop.f32.mrb[0].mxu0
          %v947 = vadd.f32 %v843, %v946
          %v948 = vpop.f32.mrb[0].mxu0
          %949 = vdwg.mxu0
          %950 = vmatprep.subr.mxu0 0.0
          %v951 = vand.u32 %v587, 4294901760
          %952 = vmatpush1.msra.mxu0 %v951
          %953 = vmatprep.subr.mxu0 0.0
          %v954 = vand.u32 %v588, 4294901760
          %955 = vmatpush1.msra.mxu0 %v954
          %956 = vmatprep.subr.mxu0 0.0
          %v957 = vand.u32 %v589, 4294901760
          %958 = vmatpush1.msra.mxu0 %v957
          %959 = vmatprep.subr.mxu0 0.0
          %v960 = vand.u32 %v590, 4294901760
          %961 = vmatpush1.msra.mxu0 %v960
          %962 = vmatprep.subr.mxu0 0.0
          %v963 = vand.u32 %v591, 4294901760
          %964 = vmatpush1.msra.mxu0 %v963
          %965 = vmatprep.subr.mxu0 0.0
          %v966 = vand.u32 %v592, 4294901760
          %967 = vmatpush1.msra.mxu0 %v966
          %968 = vmatprep.subr.mxu0 0.0
          %v969 = vand.u32 %v593, 4294901760
          %970 = vmatpush1.msra.mxu0 %v969
          %971 = vmatprep.subr.mxu0 0.0
          %v972 = vand.u32 %v594, 4294901760
          %973 = vmatpush1.msra.mxu0 %v972
          %974 = vmatprep.subr.mxu0 0.0
          %v975 = vand.u32 %v595, 4294901760
          %976 = vmatpush1.msra.mxu0 %v975
          %977 = vmatprep.subr.mxu0 0.0
          %v978 = vand.u32 %v596, 4294901760
          %979 = vmatpush1.msra.mxu0 %v978
          %980 = vmatprep.subr.mxu0 0.0
          %v981 = vand.u32 %v597, 4294901760
          %982 = vmatpush1.msra.mxu0 %v981
          %983 = vmatprep.subr.mxu0 0.0
          %v984 = vand.u32 %v598, 4294901760
          %985 = vmatpush1.msra.mxu0 %v984
          %986 = vmatprep.subr.mxu0 0.0
          %v987 = vand.u32 %v599, 4294901760
          %988 = vmatpush1.msra.mxu0 %v987
          %989 = vmatprep.subr.mxu0 0.0
          %v990 = vand.u32 %v600, 4294901760
          %991 = vmatpush1.msra.mxu0 %v990
          %992 = vmatprep.subr.mxu0 0.0
          %v993 = vand.u32 %v601, 4294901760
          %994 = vmatpush1.msra.mxu0 %v993
          %995 = vmatprep.subr.mxu0 0.0
          %v996 = vand.u32 %v602, 4294901760
          %997 = vmatpush1.msra.mxu0 %v996
          %998 = vmatprep.subr.mxu0 0.0
          %999 = vmatpush1.msra.mxu0 0.0
          %1000 = vmatprep.subr.mxu0 0.0
          %1001 = vmatpush1.msra.mxu0 0.0
          %1002 = vmatprep.subr.mxu0 0.0
          %1003 = vmatpush1.msra.mxu0 0.0
          %1004 = vmatprep.subr.mxu0 0.0
          %1005 = vmatpush1.msra.mxu0 0.0
          %1006 = vmatprep.subr.mxu0 0.0
          %1007 = vmatpush1.msra.mxu0 0.0
          %1008 = vmatprep.subr.mxu0 0.0
          %1009 = vmatpush1.msra.mxu0 0.0
          %1010 = vmatprep.subr.mxu0 0.0
          %1011 = vmatpush1.msra.mxu0 0.0
          %1012 = vmatprep.subr.mxu0 0.0
          %1013 = vmatpush1.msra.mxu0 0.0
          %1014 = vmatprep.subr.mxu0 0.0
          %1015 = vmatpush1.msra.mxu0 0.0
          %1016 = vmatprep.subr.mxu0 0.0
          %1017 = vmatpush1.msra.mxu0 0.0
          %1018 = vmatprep.subr.mxu0 0.0
          %1019 = vmatpush1.msra.mxu0 0.0
          %1020 = vmatprep.subr.mxu0 0.0
          %1021 = vmatpush1.msra.mxu0 0.0
          %1022 = vmatprep.subr.mxu0 0.0
          %1023 = vmatpush1.msra.mxu0 0.0
          %1024 = vmatprep.subr.mxu0 0.0
          %1025 = vmatpush1.msra.mxu0 0.0
          %1026 = vmatprep.subr.mxu0 0.0
          %1027 = vmatpush1.msra.mxu0 0.0
          %1028 = vmatprep.subr.mxu0 0.0
          %1029 = vmatpush1.msra.mxu0 0.0
          %1030 = vmatprep.mubr.f32.mxu0 0.0
          %v1031 = vand.u32 %v586, 4294901760
          %v1032 = vsub.f32 %v586, %v1031
          %v1033 = vand.u32 %v1032, 4294901760
          %1034 = vmatmul.mubr.f32.gmra.mrb[0].mxu0 %v1033
          %v1035 = vpop.f32.mrb[0].mxu0
          %v1036 = vadd.f32 %v947, %v1035
          %v1037 = vpop.f32.mrb[0].mxu0
          %1038 = vdwg.mxu0
          %1039 = vmatprep.subr.mxu0 0.0
          %v1040 = vand.u32 %v587, 4294901760
          %v1041 = vsub.f32 %v587, %v1040
          %v1042 = vand.u32 %v1041, 4294901760
          %1043 = vmatpush1.msra.mxu0 %v1042
          %1044 = vmatprep.subr.mxu0 0.0
          %v1045 = vand.u32 %v588, 4294901760
          %v1046 = vsub.f32 %v588, %v1045
          %v1047 = vand.u32 %v1046, 4294901760
          %1048 = vmatpush1.msra.mxu0 %v1047
          %1049 = vmatprep.subr.mxu0 0.0
          %v1050 = vand.u32 %v589, 4294901760
          %v1051 = vsub.f32 %v589, %v1050
          %v1052 = vand.u32 %v1051, 4294901760
          %1053 = vmatpush1.msra.mxu0 %v1052
          %1054 = vmatprep.subr.mxu0 0.0
          %v1055 = vand.u32 %v590, 4294901760
          %v1056 = vsub.f32 %v590, %v1055
          %v1057 = vand.u32 %v1056, 4294901760
          %1058 = vmatpush1.msra.mxu0 %v1057
          %1059 = vmatprep.subr.mxu0 0.0
          %v1060 = vand.u32 %v591, 4294901760
          %v1061 = vsub.f32 %v591, %v1060
          %v1062 = vand.u32 %v1061, 4294901760
          %1063 = vmatpush1.msra.mxu0 %v1062
          %1064 = vmatprep.subr.mxu0 0.0
          %v1065 = vand.u32 %v592, 4294901760
          %v1066 = vsub.f32 %v592, %v1065
          %v1067 = vand.u32 %v1066, 4294901760
          %1068 = vmatpush1.msra.mxu0 %v1067
          %1069 = vmatprep.subr.mxu0 0.0
          %v1070 = vand.u32 %v593, 4294901760
          %v1071 = vsub.f32 %v593, %v1070
          %v1072 = vand.u32 %v1071, 4294901760
          %1073 = vmatpush1.msra.mxu0 %v1072
          %1074 = vmatprep.subr.mxu0 0.0
          %v1075 = vand.u32 %v594, 4294901760
          %v1076 = vsub.f32 %v594, %v1075
          %v1077 = vand.u32 %v1076, 4294901760
          %1078 = vmatpush1.msra.mxu0 %v1077
          %1079 = vmatprep.subr.mxu0 0.0
          %v1080 = vand.u32 %v595, 4294901760
          %v1081 = vsub.f32 %v595, %v1080
          %v1082 = vand.u32 %v1081, 4294901760
          %1083 = vmatpush1.msra.mxu0 %v1082
          %1084 = vmatprep.subr.mxu0 0.0
          %v1085 = vand.u32 %v596, 4294901760
          %v1086 = vsub.f32 %v596, %v1085
          %v1087 = vand.u32 %v1086, 4294901760
          %1088 = vmatpush1.msra.mxu0 %v1087
          %1089 = vmatprep.subr.mxu0 0.0
          %v1090 = vand.u32 %v597, 4294901760
          %v1091 = vsub.f32 %v597, %v1090
          %v1092 = vand.u32 %v1091, 4294901760
          %1093 = vmatpush1.msra.mxu0 %v1092
          %1094 = vmatprep.subr.mxu0 0.0
          %v1095 = vand.u32 %v598, 4294901760
          %v1096 = vsub.f32 %v598, %v1095
          %v1097 = vand.u32 %v1096, 4294901760
          %1098 = vmatpush1.msra.mxu0 %v1097
          %1099 = vmatprep.subr.mxu0 0.0
          %v1100 = vand.u32 %v599, 4294901760
          %v1101 = vsub.f32 %v599, %v1100
          %v1102 = vand.u32 %v1101, 4294901760
          %1103 = vmatpush1.msra.mxu0 %v1102
          %1104 = vmatprep.subr.mxu0 0.0
          %v1105 = vand.u32 %v600, 4294901760
          %v1106 = vsub.f32 %v600, %v1105
          %v1107 = vand.u32 %v1106, 4294901760
          %1108 = vmatpush1.msra.mxu0 %v1107
          %1109 = vmatprep.subr.mxu0 0.0
          %v1110 = vand.u32 %v601, 4294901760
          %v1111 = vsub.f32 %v601, %v1110
          %v1112 = vand.u32 %v1111, 4294901760
          %1113 = vmatpush1.msra.mxu0 %v1112
          %1114 = vmatprep.subr.mxu0 0.0
          %v1115 = vand.u32 %v602, 4294901760
          %v1116 = vsub.f32 %v602, %v1115
          %v1117 = vand.u32 %v1116, 4294901760
          %1118 = vmatpush1.msra.mxu0 %v1117
          %1119 = vmatprep.subr.mxu0 0.0
          %1120 = vmatpush1.msra.mxu0 0.0
          %1121 = vmatprep.subr.mxu0 0.0
          %1122 = vmatpush1.msra.mxu0 0.0
          %1123 = vmatprep.subr.mxu0 0.0
          %1124 = vmatpush1.msra.mxu0 0.0
          %1125 = vmatprep.subr.mxu0 0.0
          %1126 = vmatpush1.msra.mxu0 0.0
          %1127 = vmatprep.subr.mxu0 0.0
          %1128 = vmatpush1.msra.mxu0 0.0
          %1129 = vmatprep.subr.mxu0 0.0
          %1130 = vmatpush1.msra.mxu0 0.0
          %1131 = vmatprep.subr.mxu0 0.0
          %1132 = vmatpush1.msra.mxu0 0.0
          %1133 = vmatprep.subr.mxu0 0.0
          %1134 = vmatpush1.msra.mxu0 0.0
          %1135 = vmatprep.subr.mxu0 0.0
          %1136 = vmatpush1.msra.mxu0 0.0
          %1137 = vmatprep.subr.mxu0 0.0
          %1138 = vmatpush1.msra.mxu0 0.0
          %1139 = vmatprep.subr.mxu0 0.0
          %1140 = vmatpush1.msra.mxu0 0.0
          %1141 = vmatprep.subr.mxu0 0.0
          %1142 = vmatpush1.msra.mxu0 0.0
          %1143 = vmatprep.subr.mxu0 0.0
          %1144 = vmatpush1.msra.mxu0 0.0
          %1145 = vmatprep.subr.mxu0 0.0
          %1146 = vmatpush1.msra.mxu0 0.0
          %1147 = vmatprep.subr.mxu0 0.0
          %1148 = vmatpush1.msra.mxu0 0.0
          %1149 = vmatprep.subr.mxu0 0.0
          %1150 = vmatpush1.msra.mxu0 0.0
          %1151 = vmatprep.mubr.f32.mxu0 0.0
          %v1152 = vand.u32 %v586, 4294901760
          %1153 = vmatmul.mubr.f32.gmra.mrb[0].mxu0 %v1152
          %v1154 = vpop.f32.mrb[0].mxu0
          %v1155 = vadd.f32 %v1036, %v1154
          %v1156 = vpop.f32.mrb[0].mxu0
          %1157 = vdwg.mxu0
          %1158 = vmatprep.subr.mxu0 0.0
          %v1159 = vand.u32 %v587, 4294901760
          %1160 = vmatpush1.msra.mxu0 %v1159
          %1161 = vmatprep.subr.mxu0 0.0
          %v1162 = vand.u32 %v588, 4294901760
          %1163 = vmatpush1.msra.mxu0 %v1162
          %1164 = vmatprep.subr.mxu0 0.0
          %v1165 = vand.u32 %v589, 4294901760
          %1166 = vmatpush1.msra.mxu0 %v1165
          %1167 = vmatprep.subr.mxu0 0.0
          %v1168 = vand.u32 %v590, 4294901760
          %1169 = vmatpush1.msra.mxu0 %v1168
          %1170 = vmatprep.subr.mxu0 0.0
          %v1171 = vand.u32 %v591, 4294901760
          %1172 = vmatpush1.msra.mxu0 %v1171
          %1173 = vmatprep.subr.mxu0 0.0
          %v1174 = vand.u32 %v592, 4294901760
          %1175 = vmatpush1.msra.mxu0 %v1174
          %1176 = vmatprep.subr.mxu0 0.0
          %v1177 = vand.u32 %v593, 4294901760
          %1178 = vmatpush1.msra.mxu0 %v1177
          %1179 = vmatprep.subr.mxu0 0.0
          %v1180 = vand.u32 %v594, 4294901760
          %1181 = vmatpush1.msra.mxu0 %v1180
          %1182 = vmatprep.subr.mxu0 0.0
          %v1183 = vand.u32 %v595, 4294901760
          %1184 = vmatpush1.msra.mxu0 %v1183
          %1185 = vmatprep.subr.mxu0 0.0
          %v1186 = vand.u32 %v596, 4294901760
          %1187 = vmatpush1.msra.mxu0 %v1186
          %1188 = vmatprep.subr.mxu0 0.0
          %v1189 = vand.u32 %v597, 4294901760
          %1190 = vmatpush1.msra.mxu0 %v1189
          %1191 = vmatprep.subr.mxu0 0.0
          %v1192 = vand.u32 %v598, 4294901760
          %1193 = vmatpush1.msra.mxu0 %v1192
          %1194 = vmatprep.subr.mxu0 0.0
          %v1195 = vand.u32 %v599, 4294901760
          %1196 = vmatpush1.msra.mxu0 %v1195
          %1197 = vmatprep.subr.mxu0 0.0
          %v1198 = vand.u32 %v600, 4294901760
          %1199 = vmatpush1.msra.mxu0 %v1198
          %1200 = vmatprep.subr.mxu0 0.0
          %v1201 = vand.u32 %v601, 4294901760
          %1202 = vmatpush1.msra.mxu0 %v1201
          %1203 = vmatprep.subr.mxu0 0.0
          %v1204 = vand.u32 %v602, 4294901760
          %1205 = vmatpush1.msra.mxu0 %v1204
          %1206 = vmatprep.subr.mxu0 0.0
          %1207 = vmatpush1.msra.mxu0 0.0
          %1208 = vmatprep.subr.mxu0 0.0
          %1209 = vmatpush1.msra.mxu0 0.0
          %1210 = vmatprep.subr.mxu0 0.0
          %1211 = vmatpush1.msra.mxu0 0.0
          %1212 = vmatprep.subr.mxu0 0.0
          %1213 = vmatpush1.msra.mxu0 0.0
          %1214 = vmatprep.subr.mxu0 0.0
          %1215 = vmatpush1.msra.mxu0 0.0
          %1216 = vmatprep.subr.mxu0 0.0
          %1217 = vmatpush1.msra.mxu0 0.0
          %1218 = vmatprep.subr.mxu0 0.0
          %1219 = vmatpush1.msra.mxu0 0.0
          %1220 = vmatprep.subr.mxu0 0.0
          %1221 = vmatpush1.msra.mxu0 0.0
          %1222 = vmatprep.subr.mxu0 0.0
          %1223 = vmatpush1.msra.mxu0 0.0
          %1224 = vmatprep.subr.mxu0 0.0
          %1225 = vmatpush1.msra.mxu0 0.0
          %1226 = vmatprep.subr.mxu0 0.0
          %1227 = vmatpush1.msra.mxu0 0.0
          %1228 = vmatprep.subr.mxu0 0.0
          %1229 = vmatpush1.msra.mxu0 0.0
          %1230 = vmatprep.subr.mxu0 0.0
          %1231 = vmatpush1.msra.mxu0 0.0
          %1232 = vmatprep.subr.mxu0 0.0
          %1233 = vmatpush1.msra.mxu0 0.0
          %1234 = vmatprep.subr.mxu0 0.0
          %1235 = vmatpush1.msra.mxu0 0.0
          %1236 = vmatprep.subr.mxu0 0.0
          %1237 = vmatpush1.msra.mxu0 0.0
          %1238 = vmatprep.mubr.f32.mxu0 0.0
          %v1239 = vand.u32 %v586, 4294901760
          %1240 = vmatmul.mubr.f32.gmra.mrb[0].mxu0 %v1239
          %v1241 = vpop.f32.mrb[0].mxu0
          %v1242 = vadd.f32 %v1155, %v1241
          %v1243 = vpop.f32.mrb[0].mxu0
          %1244 = vdwg.mxu0
          %v1245 = vlaneseq
          %v1246 = vshrl.u32 %v1245, 7
          %v1247 = vsub.s32 0, %v1246
          %v1248 = vrot.slane %v1242, %v1247
          %1249 = vst [vmem:[%s315] sm:$0xff] %v1248
        $region64: #{tpu_custom_call.1} parent=43 // pred_fallthru
          _
        %s1250 = sand.u32 %s177, 1
        %s1251 = scalar_lea.sflag [#allocation5], %s1250
        %s1252 = sand.u32 %s177, 1
        %s1253 = smul.addr %s1252, 8
        %s1254 = scalar_lea.vmem [#allocation9], %s1253
        // Predicated region
        $region65: #{tpu_custom_call.1} parent=43 // pred_check
          %p1255 = pneg %p187
        $region66: #{tpu_custom_call.1} parent=43 // pred_check_branch
          %1257 = sbr.rel (%p1255) target = $region68
        $region67: #{tpu_custom_call.1} parent=43 // pred_region
          %s1259 = ssub.s32 128, 128
          %1260 = vsyncadd %s1251, %s1259
          %s1261 = smul.addr %s28, 128
          %s1262 = scalar_lea.hbm %s6, %s1261
          %s1264 = sshll.u32 %s1254, 4
          %s1265 = int_to_ptr.vmem [resolvable:$true] %s1264
          %1267 = dma.vmem_to_hbm [thread:$0]  %s1265, 128, %s1262, %s1251
        $region68: #{tpu_custom_call.1} parent=43 // pred_fallthru
          _
      $region44: #{tpu_custom_call.1} parent=5 // pred_fallthru
        _
      %p1268 = scmp.le.s32.totalorder 2, %s19
      // Predicated region
      $region69: #{tpu_custom_call.1} parent=5 // pred_check
        %p1269 = pneg %p1268
      $region70: #{tpu_custom_call.1} parent=5 // pred_check_branch
        %1271 = sbr.rel (%p1269) target = $region72
      $region71: #{tpu_custom_call.1} parent=5 // pred_region
        %s1272 = ssub.s32 %s19, 2
        // Predicated region
        $region73: #{tpu_custom_call.1} parent=71 // pred_check
          %p1273 = pneg %p193
        $region74: #{tpu_custom_call.1} parent=71 // pred_check_branch
          %1275 = sbr.rel (%p1273) target = $region76
        $region75: #{tpu_custom_call.1} parent=71 // pred_region
          %s1276 = sand.u32 %s178, 1
          %s1277 = scalar_lea.sflag [#allocation5], %s1276
          %s1278 = sand.u32 %s178, 1
          %s1279 = smul.addr %s1278, 8
          %s1280 = scalar_lea.vmem [#allocation9], %s1279
          %1281 = dma.done %s1277, 128
        $region76: #{tpu_custom_call.1} parent=71 // pred_fallthru
          _
      $region72: #{tpu_custom_call.1} parent=5 // pred_fallthru
        _
    $region6: #{tpu_custom_call.1} parent=1 // loop_footer
      %s23 = sadd.s32 1, %s19
    $region7: #{tpu_custom_call.1} parent=1 // loop_footer_branch
      %18 = sbr.rel target = $region3
    $region8: #{tpu_custom_call.1} parent=1 // loop_exit
      _
    %1282 = vsyncpa [#allocation4], 1
    %s1283 = scalar_lea.sflag [#allocation4], 1
    %1284 = vsyncpa %s1283, 1
    %1285 = vsyncpa [#allocation7], 1
    %1286 = vsyncpa [#allocation5], 1
    %s1287 = scalar_lea.sflag [#allocation5], 1
    %1288 = vsyncpa %s1287, 1

// kernel: tpu_custom_call.1
$region0: #{tpu_custom_call.1}
  #allocation0 [shape = 'u32[]', space=smem, size = 0x4, offset = 0x4, fixed_abs, tag = 'smem constant byte address 0x4 - core index']
  #allocation1 [shape = 'u32[144,128]{1,0:T(1,128)}', space=vmem, size = 0x12000, scoped, tag = 'internal scratch']
  #allocation2 [shape = 'f32[1,128]{1,0:T(1,128)}', space=vmem, size = 0x200, scoped, tag = 'scratch operand']
  %s0 = inlined_call_operand.hbm [shape: bf16[2,64,147], index: 0, kind: input, shape index: {}]
  %s1 = inlined_call_operand.hbm [shape: bf16[147,128], index: 1, kind: input, shape index: {}]
  %s2 = inlined_call_operand.vmem [shape: f32[1,128], index: 2, kind: input, shape index: {}]
  %s3 = inlined_call_operand.vmem [shape: f32[1,128], index: 3, kind: input, shape index: {}]
  %s4 = inlined_call_operand.hbm [shape: f32[128,128], index: 4, kind: input, shape index: {}]
  %s5 = inlined_call_operand.vmem [shape: f32[1,128], index: 5, kind: input, shape index: {}]
  %s6 = inlined_call_operand.hbm [shape: f32[2,8,128], index: 6, kind: output, shape index: {}]
  %s7 = sld [smem:[#allocation0]]
  $region77: #{tpu_custom_call.1} parent=0
    _
  %s9 = ssub.s32 1, %s7
  %s10 = scalar_select 0, %s9, %s7
  $region1: #{tpu_custom_call.1} parent=0
    #allocation3 [shape = 'u8[65536]{0}', space=vmem, size = 0x10000, scoped, tag = 'input window, operand 0']
    #allocation4 [shape = 's32[2]{0}', space=sflag, size = 0x8, scoped, tag = 'scoped memory for tpu_custom_call.1']
    #allocation5 [shape = 's32[2]{0}', space=sflag, size = 0x8, scoped, tag = 'scoped memory for tpu_custom_call.1']
    #allocation6 [shape = 'u8[38912]{0}', space=vmem, size = 0x9800, scoped, tag = 'input window, operand 1, single buffered']
    #allocation7 [shape = 's32[1]{0}', space=sflag, size = 0x4, scoped, tag = 'scoped memory for tpu_custom_call.1']
    #allocation8 [shape = 'u8[65536]{0}', space=vmem, size = 0x10000, scoped, tag = 'input window, operand 4, single buffered']
    #allocation9 [shape = 'u8[8192]{0}', space=vmem, size = 0x2000, scoped, tag = 'output window, operand 0']
    %11 = vsyncpa [#allocation4], 0
    %s12 = scalar_lea.sflag [#allocation4], 1
    %13 = vsyncpa %s12, 0
    %14 = vsyncpa [#allocation7], 0
    %15 = vsyncpa [#allocation5], 0
    %s16 = scalar_lea.sflag [#allocation5], 1
    %17 = vsyncpa %s16, 0
    loop: start=0, step=1, limit=4
    $region2: #{tpu_custom_call.1} parent=1 // loop_pre_header
      _
    $region3: #{tpu_custom_call.1} parent=1 // loop_header
      %s19 = sphi 0, %s23
      %p20 = scmp.ge.s32.totalorder %s19, 4
      %s26 = sphi 0, %s38
      %s27 = sphi 0, %s34
      %s28 = sphi 0, %s26
      %s29 = sphi 0, %s27
      %s30 = sphi 0, %s28
      %s31 = sphi 0, %s29
      %s43 = sphi 0, %s45
      %s46 = sphi 0, %s43
      %s47 = sphi 0, %s46
      %s63 = sphi 0, %s47
      %s67 = sphi 0, %s67
      %s69 = sphi 0, %s67
      %s70 = sphi 0, %s69
      %s84 = sphi 0, %s70
      %s88 = sphi 0, %s88
      %s90 = sphi 0, %s88
      %s91 = sphi 0, %s90
      %s105 = sphi 0, %s91
      %s109 = sphi 0, %s109
      %s111 = sphi 0, %s109
      %s112 = sphi 0, %s111
      %s126 = sphi 0, %s112
      %s130 = sphi 0, %s130
      %s132 = sphi 0, %s130
      %s133 = sphi 0, %s132
      %s147 = sphi 0, %s133
      %s151 = sphi 0, %s151
      %s153 = sphi 0, %s151
      %s154 = sphi 0, %s153
      %s168 = sphi 0, %s154
      %s174 = sphi 0, %s176
      %s177 = sphi 0, %s174
      %s178 = sphi 0, %s177
      %s194 = sphi 0, %s178
    $region4: #{tpu_custom_call.1} parent=1 // loop_header_branch
      %22 = sbr.rel (%p20) target = $region8
    $region5: #{tpu_custom_call.1} parent=1 // loop_body
      %s24 = ssub.s32 %s19, 1
      %s25 = ssub.s32 %s19, 2
      %s32 = sadd.s32 1, %s27
      %p33 = scmp.ge.s32.totalorder %s32, 1
      %s34 = scalar_select %p33, 0, %s32
      %s35 = sadd.s32 1, %s26
      %s36 = scalar_select %p33, %s35, %s26
      %p37 = scmp.ge.s32.totalorder %s36, 2
      %s38 = scalar_select %p37, 0, %s36
      %s39 = ssub.s32 %s26, %s38
      %s40 = ssub.s32 %s27, %s34
      %s41 = sor.u32 %s39, %s40
      %p42 = scmp.eq.s32.totalorder %s41, 0
      %s44 = sadd.s32 %s43, 1
      %s45 = scalar_select %p42, %s43, %s44
      %p48 = pneg %p42
      %p49 = scmp.eq.s32.totalorder %s19, 1
      %p50 = por %p48, %p49
      %p51 = scmp.ne.s32.totalorder %s43, %s46
      %p52 = scmp.eq.s32.totalorder %s19, 0
      %p53 = por %p51, %p52
      %p54 = scmp.ne.s32.totalorder %s43, %s46
      %p55 = scmp.eq.s32.totalorder %s24, 1
      %p56 = por %p54, %p55
      %p57 = scmp.ne.s32.totalorder %s46, %s47
      %p58 = scmp.eq.s32.totalorder %s24, 0
      %p59 = por %p57, %p58
      %p60 = scmp.ne.s32.totalorder %s46, %s47
      %p61 = scmp.eq.s32.totalorder %s25, 1
      %p62 = por %p60, %p61
      %p64 = scmp.ne.s32.totalorder %s47, %s63
      %p65 = scmp.eq.s32.totalorder %s25, 0
      %p66 = por %p64, %p65
      %s68 = sadd.s32 %s67, 1
      %p71 = scmp.eq.s32.totalorder %s19, 1
      %p72 = scmp.ne.s32.totalorder %s67, %s69
      %p73 = scmp.eq.s32.totalorder %s19, 0
      %p74 = por %p72, %p73
      %p75 = scmp.ne.s32.totalorder %s67, %s69
      %p76 = scmp.eq.s32.totalorder %s24, 1
      %p77 = por %p75, %p76
      %p78 = scmp.ne.s32.totalorder %s69, %s70
      %p79 = scmp.eq.s32.totalorder %s24, 0
      %p80 = por %p78, %p79
      %p81 = scmp.ne.s32.totalorder %s69, %s70
      %p82 = scmp.eq.s32.totalorder %s25, 1
      %p83 = por %p81, %p82
      %p85 = scmp.ne.s32.totalorder %s70, %s84
      %p86 = scmp.eq.s32.totalorder %s25, 0
      %p87 = por %p85, %p86
      %s89 = sadd.s32 %s88, 1
      %p92 = scmp.eq.s32.totalorder %s19, 1
      %p93 = scmp.ne.s32.totalorder %s88, %s90
      %p94 = scmp.eq.s32.totalorder %s19, 0
      %p95 = por %p93, %p94
      %p96 = scmp.ne.s32.totalorder %s88, %s90
      %p97 = scmp.eq.s32.totalorder %s24, 1
      %p98 = por %p96, %p97
      %p99 = scmp.ne.s32.totalorder %s90, %s91
      %p100 = scmp.eq.s32.totalorder %s24, 0
      %p101 = por %p99, %p100
      %p102 = scmp.ne.s32.totalorder %s90, %s91
      %p103 = scmp.eq.s32.totalorder %s25, 1
      %p104 = por %p102, %p103
      %p106 = scmp.ne.s32.totalorder %s91, %s105
      %p107 = scmp.eq.s32.totalorder %s25, 0
      %p108 = por %p106, %p107
      %s110 = sadd.s32 %s109, 1
      %p113 = scmp.eq.s32.totalorder %s19, 1
      %p114 = scmp.ne.s32.totalorder %s109, %s111
      %p115 = scmp.eq.s32.totalorder %s19, 0
      %p116 = por %p114, %p115
      %p117 = scmp.ne.s32.totalorder %s109, %s111
      %p118 = scmp.eq.s32.totalorder %s24, 1
      %p119 = por %p117, %p118
      %p120 = scmp.ne.s32.totalorder %s111, %s112
      %p121 = scmp.eq.s32.totalorder %s24, 0
      %p122 = por %p120, %p121
      %p123 = scmp.ne.s32.totalorder %s111, %s112
      %p124 = scmp.eq.s32.totalorder %s25, 1
      %p125 = por %p123, %p124
      %p127 = scmp.ne.s32.totalorder %s112, %s126
      %p128 = scmp.eq.s32.totalorder %s25, 0
      %p129 = por %p127, %p128
      %s131 = sadd.s32 %s130, 1
      %p134 = scmp.eq.s32.totalorder %s19, 1
      %p135 = scmp.ne.s32.totalorder %s130, %s132
      %p136 = scmp.eq.s32.totalorder %s19, 0
      %p137 = por %p135, %p136
      %p138 = scmp.ne.s32.totalorder %s130, %s132
      %p139 = scmp.eq.s32.totalorder %s24, 1
      %p140 = por %p138, %p139
      %p141 = scmp.ne.s32.totalorder %s132, %s133
      %p142 = scmp.eq.s32.totalorder %s24, 0
      %p143 = por %p141, %p142
      %p144 = scmp.ne.s32.totalorder %s132, %s133
      %p145 = scmp.eq.s32.totalorder %s25, 1
      %p146 = por %p144, %p145
      %p148 = scmp.ne.s32.totalorder %s133, %s147
      %p149 = scmp.eq.s32.totalorder %s25, 0
      %p150 = por %p148, %p149
      %s152 = sadd.s32 %s151, 1
      %p155 = scmp.eq.s32.totalorder %s19, 1
      %p156 = scmp.ne.s32.totalorder %s151, %s153
      %p157 = scmp.eq.s32.totalorder %s19, 0
      %p158 = por %p156, %p157
      %p159 = scmp.ne.s32.totalorder %s151, %s153
      %p160 = scmp.eq.s32.totalorder %s24, 1
      %p161 = por %p159, %p160
      %p162 = scmp.ne.s32.totalorder %s153, %s154
      %p163 = scmp.eq.s32.totalorder %s24, 0
      %p164 = por %p162, %p163
      %p165 = scmp.ne.s32.totalorder %s153, %s154
      %p166 = scmp.eq.s32.totalorder %s25, 1
      %p167 = por %p165, %p166
      %p169 = scmp.ne.s32.totalorder %s154, %s168
      %p170 = scmp.eq.s32.totalorder %s25, 0
      %p171 = por %p169, %p170
      %s172 = ssub.s32 %s26, %s38
      %p173 = scmp.eq.s32.totalorder %s172, 0
      %s175 = sadd.s32 %s174, 1
      %s176 = scalar_select %p173, %s174, %s175
      %p179 = pneg %p173
      %p180 = scmp.eq.s32.totalorder %s19, 1
      %p181 = por %p179, %p180
      %p182 = scmp.ne.s32.totalorder %s174, %s177
      %p183 = scmp.eq.s32.totalorder %s19, 0
      %p184 = por %p182, %p183
      %p185 = scmp.ne.s32.totalorder %s174, %s177
      %p186 = scmp.eq.s32.totalorder %s24, 1
      %p187 = por %p185, %p186
      %p188 = scmp.ne.s32.totalorder %s177, %s178
      %p189 = scmp.eq.s32.totalorder %s24, 0
      %p190 = por %p188, %p189
      %p191 = scmp.ne.s32.totalorder %s177, %s178
      %p192 = scmp.eq.s32.totalorder %s25, 1
      %p193 = por %p191, %p192
      %p195 = scmp.ne.s32.totalorder %s178, %s194
      %p196 = scmp.eq.s32.totalorder %s25, 0
      %p197 = por %p195, %p196
      %p198 = scmp.le.s32.totalorder 1, %s19
      %p199 = scmp.lt.s32.totalorder %s19, 3
      %p200 = pnand %p198, %p199
      %p201 = pneg %p200
      // Predicated region
      $region9: #{tpu_custom_call.1} parent=5 // pred_check
        _
      $region10: #{tpu_custom_call.1} parent=5 // pred_check_branch
        %203 = sbr.rel (%p200) target = $region12
      $region11: #{tpu_custom_call.1} parent=5 // pred_region
        %s204 = ssub.s32 %s19, 1
        // Predicated region
        $region13: #{tpu_custom_call.1} parent=11 // pred_check
          %p205 = pneg %p80
        $region14: #{tpu_custom_call.1} parent=11 // pred_check_branch
          %207 = sbr.rel (%p205) target = $region16
        $region15: #{tpu_custom_call.1} parent=11 // pred_region
          %s209 = ssub.s32 1216, 1216
          %210 = vsyncadd [#allocation7], %s209
          %s211 = sshll.u32 [#allocation6], 4
          %s212 = int_to_ptr.vmem [resolvable:$true] %s211
          %217 = dma.hbm_to_vmem [thread:$0]  %s1, 1216, %s212, [#allocation7], 64, 64, 4
        $region16: #{tpu_custom_call.1} parent=11 // pred_fallthru
          _
        // Predicated region
        $region17: #{tpu_custom_call.1} parent=11 // pred_check
          %p218 = pneg %p101
        $region18: #{tpu_custom_call.1} parent=11 // pred_check_branch
          %220 = sbr.rel (%p218) target = $region20
        $region19: #{tpu_custom_call.1} parent=11 // pred_region
          _
        $region20: #{tpu_custom_call.1} parent=11 // pred_fallthru
          _
        // Predicated region
        $region21: #{tpu_custom_call.1} parent=11 // pred_check
          %p221 = pneg %p122
        $region22: #{tpu_custom_call.1} parent=11 // pred_check_branch
          %223 = sbr.rel (%p221) target = $region24
        $region23: #{tpu_custom_call.1} parent=11 // pred_region
          _
        $region24: #{tpu_custom_call.1} parent=11 // pred_fallthru
          _
        // Predicated region
        $region25: #{tpu_custom_call.1} parent=11 // pred_check
          %p224 = pneg %p143
        $region26: #{tpu_custom_call.1} parent=11 // pred_check_branch
          %226 = sbr.rel (%p224) target = $region28
        $region27: #{tpu_custom_call.1} parent=11 // pred_region
          %s228 = ssub.s32 2048, 2048
          %229 = vsyncadd [#allocation7], %s228
          %s230 = sshll.u32 [#allocation8], 4
          %s231 = int_to_ptr.vmem [resolvable:$true] %s230
          %236 = dma.hbm_to_vmem [thread:$0]  %s4, 2048, %s231, [#allocation7], 128, 128, 8
        $region28: #{tpu_custom_call.1} parent=11 // pred_fallthru
          _
        // Predicated region
        $region29: #{tpu_custom_call.1} parent=11 // pred_check
          %p237 = pneg %p164
        $region30: #{tpu_custom_call.1} parent=11 // pred_check_branch
          %239 = sbr.rel (%p237) target = $region32
        $region31: #{tpu_custom_call.1} parent=11 // pred_region
          _
        $region32: #{tpu_custom_call.1} parent=11 // pred_fallthru
          _
      $region12: #{tpu_custom_call.1} parent=5 // pred_fallthru
        _
      %p240 = scmp.lt.s32.totalorder %s19, 2
      // Predicated region
      $region33: #{tpu_custom_call.1} parent=5 // pred_check
        %p241 = pneg %p240
      $region34: #{tpu_custom_call.1} parent=5 // pred_check_branch
        %243 = sbr.rel (%p241) target = $region36
      $region35: #{tpu_custom_call.1} parent=5 // pred_region
        // Predicated region
        $region37: #{tpu_custom_call.1} parent=35 // pred_check
          %p244 = pneg %p53
        $region38: #{tpu_custom_call.1} parent=35 // pred_check_branch
          %246 = sbr.rel (%p244) target = $region40
        $region39: #{tpu_custom_call.1} parent=35 // pred_region
          %s247 = sand.u32 %s43, 1
          %s248 = scalar_lea.sflag [#allocation4], %s247
          %s249 = sand.u32 %s43, 1
          %s250 = smul.addr %s249, 64
          %s251 = scalar_lea.vmem [#allocation3], %s250
          %s252 = smul.u32 8, %s27
          %s254 = ssub.s32 1024, 1024
          %255 = vsyncadd %s248, %s254
          %s256 = smul.addr %s252, 2
          %s257 = smul.addr %s26, 16
          %s258 = sadd.s32 %s256, %s257
          %s259 = smul.addr %s258, 64
          %s260 = scalar_lea.hbm %s0, %s259
          %s261 = sshll.u32 %s251, 4
          %s262 = int_to_ptr.vmem [resolvable:$true] %s261
          %267 = dma.hbm_to_vmem [thread:$0]  %s260, 1024, %s262, %s248, 128, 128, 8
        $region40: #{tpu_custom_call.1} parent=35 // pred_fallthru
          _
      $region36: #{tpu_custom_call.1} parent=5 // pred_fallthru
        _
      %p268 = scmp.le.s32.totalorder 1, %s19
      %p269 = scmp.lt.s32.totalorder %s19, 3
      %p270 = pnand %p268, %p269
      %p271 = pneg %p270
      // Predicated region
      $region41: #{tpu_custom_call.1} parent=5 // pred_check
        _
      $region42: #{tpu_custom_call.1} parent=5 // pred_check_branch
        %273 = sbr.rel (%p270) target = $region44
      $region43: #{tpu_custom_call.1} parent=5 // pred_region
        %s274 = ssub.s32 %s19, 1
        %s275 = sand.u32 %s46, 1
        %s276 = scalar_lea.sflag [#allocation4], %s275
        %s277 = sand.u32 %s46, 1
        %s278 = smul.addr %s277, 64
        %s279 = scalar_lea.vmem [#allocation3], %s278
        // Predicated region
        $region45: #{tpu_custom_call.1} parent=43 // pred_check
          %p280 = pneg %p59
        $region46: #{tpu_custom_call.1} parent=43 // pred_check_branch
          %282 = sbr.rel (%p280) target = $region48
        $region47: #{tpu_custom_call.1} parent=43 // pred_region
          %283 = dma.done %s276, 1024
        $region48: #{tpu_custom_call.1} parent=43 // pred_fallthru
          _
        // Predicated region
        $region49: #{tpu_custom_call.1} parent=43 // pred_check
          %p284 = pneg %p80
        $region50: #{tpu_custom_call.1} parent=43 // pred_check_branch
          %286 = sbr.rel (%p284) target = $region52
        $region51: #{tpu_custom_call.1} parent=43 // pred_region
          %287 = dma.done [#allocation7], 1216
        $region52: #{tpu_custom_call.1} parent=43 // pred_fallthru
          _
        // Predicated region
        $region53: #{tpu_custom_call.1} parent=43 // pred_check
          %p288 = pneg %p143
        $region54: #{tpu_custom_call.1} parent=43 // pred_check_branch
          %290 = sbr.rel (%p288) target = $region56
        $region55: #{tpu_custom_call.1} parent=43 // pred_region
          %291 = dma.done [#allocation7], 2048
        $region56: #{tpu_custom_call.1} parent=43 // pred_fallthru
          _
        %s292 = sand.u32 %s46, 1
        %s293 = scalar_lea.sflag [#allocation4], %s292
        %s294 = sand.u32 %s46, 1
        %s295 = smul.addr %s294, 64
        %s296 = scalar_lea.vmem [#allocation3], %s295
        %p297 = pneg %p59
        %p298 = pneg %p56
        %p299 = pneg %p80
        %p300 = pneg %p77
        %p301 = pneg %p101
        %p302 = pneg %p98
        %p303 = pneg %p122
        %p304 = pneg %p119
        %p305 = pneg %p143
        %p306 = pneg %p140
        %p307 = pneg %p164
        %p308 = pneg %p161
        %p309 = pneg %p190
        %p310 = pneg %p187
        %s311 = sand.u32 %s177, 1
        %s312 = scalar_lea.sflag [#allocation5], %s311
        %s313 = sand.u32 %s177, 1
        %s314 = smul.addr %s313, 8
        %s315 = scalar_lea.vmem [#allocation9], %s314
        %s316 = smul.u32 8, %s29
        %p318 = scmp.eq.s32.totalorder %s29, 0
        // Predicated region
        $region57: #{tpu_custom_call.1} parent=43 // pred_check
          %p319 = pneg %p318
        $region58: #{tpu_custom_call.1} parent=43 // pred_check_branch
          %321 = sbr.rel (%p319) target = $region60
        $region59: #{tpu_custom_call.1} parent=43 // pred_region
          %322 = vst [vmem:[#allocation2] sm:$0x1] 0.0
        $region60: #{tpu_custom_call.1} parent=43 // pred_fallthru
          _
        %v323 = vld [vmem:[%s279] sm:$0xff]
        %v324 = vld [vmem:[%s279 + $0x8] sm:$0xff]
        %v325 = vld [vmem:[%s279 + $0x10] sm:$0xff]
        %v326 = vld [vmem:[%s279 + $0x18] sm:$0xff]
        %v327 = vld [vmem:[%s279 + $0x20] sm:$0xff]
        %v328 = vld [vmem:[%s279 + $0x28] sm:$0xff]
        %v329 = vld [vmem:[%s279 + $0x30] sm:$0xff]
        %v330 = vld [vmem:[%s279 + $0x38] sm:$0xff]
        %v331 = vld [vmem:[#allocation6] sm:$0xf]
        %v332 = vld [vmem:[#allocation6 + $0x4] sm:$0xf]
        %v333 = vld [vmem:[#allocation6 + $0x8] sm:$0xf]
        %v334 = vld [vmem:[#allocation6 + $0xc] sm:$0xf]
        %v335 = vld [vmem:[#allocation6 + $0x10] sm:$0xf]
        %v336 = vld [vmem:[#allocation6 + $0x14] sm:$0xf]
        %v337 = vld [vmem:[#allocation6 + $0x18] sm:$0xf]
        %v338 = vld [vmem:[#allocation6 + $0x1c] sm:$0xf]
        %v339 = vld [vmem:[#allocation6 + $0x20] sm:$0xf]
        %v340 = vld [vmem:[#allocation6 + $0x24] sm:$0xf]
        %v341 = vld [vmem:[#allocation6 + $0x28] sm:$0xf]
        %v342 = vld [vmem:[#allocation6 + $0x2c] sm:$0xf]
        %v343 = vld [vmem:[#allocation6 + $0x30] sm:$0xf]
        %v344 = vld [vmem:[#allocation6 + $0x34] sm:$0xf]
        %v345 = vld [vmem:[#allocation6 + $0x38] sm:$0xf]
        %v346 = vld [vmem:[#allocation6 + $0x3c] sm:$0xf]
        %v347 = vld [vmem:[#allocation6 + $0x40] sm:$0xf]
        %v348 = vld [vmem:[#allocation6 + $0x44] sm:$0xf]
        %v349 = vld [vmem:[#allocation6 + $0x48] sm:$0x3]
        %v358 = vunpack.c.l.b16 %v323
        %v359 = vunpack.c.h.b16 %v323
        %v360 = vunpack.c.l.b16 %v324
        %v361 = vunpack.c.h.b16 %v324
        %v362 = vunpack.c.l.b16 %v325
        %v363 = vunpack.c.h.b16 %v325
        %v364 = vunpack.c.l.b16 %v326
        %v365 = vunpack.c.h.b16 %v326
        %v366 = vunpack.c.l.b16 %v327
        %v367 = vunpack.c.h.b16 %v327
        %v368 = vunpack.c.l.b16 %v328
        %v369 = vunpack.c.h.b16 %v328
        %v370 = vunpack.c.l.b16 %v329
        %v371 = vunpack.c.h.b16 %v329
        %v372 = vunpack.c.l.b16 %v330
        %v373 = vunpack.c.h.b16 %v330
        %v374 = vpack.c.b16 %v360, %v358
        %v375 = vpack.c.b16 %v361, %v359
        %v376 = vpack.c.b16 %v364, %v362
        %v377 = vpack.c.b16 %v365, %v363
        %v378 = vpack.c.b16 %v368, %v366
        %v379 = vpack.c.b16 %v369, %v367
        %v380 = vpack.c.b16 %v372, %v370
        %v381 = vpack.c.b16 %v373, %v371
        %v405 = vunpack.c.l.b16 %v331
        %v406 = vunpack.c.l.b16 %v332
        %v407 = vunpack.c.l.b16 %v333
        %v408 = vunpack.c.l.b16 %v334
        %v409 = vunpack.c.l.b16 %v335
        %v410 = vunpack.c.l.b16 %v336
        %v411 = vunpack.c.l.b16 %v337
        %v412 = vunpack.c.l.b16 %v338
        %v413 = vunpack.c.l.b16 %v339
        %v414 = vunpack.c.l.b16 %v340
        %v415 = vunpack.c.l.b16 %v341
        %v416 = vunpack.c.l.b16 %v342
        %v417 = vunpack.c.l.b16 %v343
        %v418 = vunpack.c.l.b16 %v344
        %v419 = vunpack.c.l.b16 %v345
        %v420 = vunpack.c.l.b16 %v346
        %v421 = vunpack.c.l.b16 %v347
        %v422 = vunpack.c.l.b16 %v348
        %v423 = vunpack.c.l.b16 %v349
        %v424 = vpack.c.b16 %v406, %v405
        %v425 = vpack.c.b16 %v408, %v407
        %v426 = vpack.c.b16 %v410, %v409
        %v427 = vpack.c.b16 %v412, %v411
        %v428 = vpack.c.b16 %v414, %v413
        %v429 = vpack.c.b16 %v416, %v415
        %v430 = vpack.c.b16 %v418, %v417
        %v431 = vpack.c.b16 %v420, %v419
        %v432 = vpack.c.b16 %v422, %v421
        %v433 = vpack.c.b16 %v423, %v423
        %vm443 = vcmask 154624
        %v445 = vsel %vm443, %v375, 0
        %v448 = vsel %vm443, %v377, 0
        %v451 = vsel %vm443, %v379, 0
        %v454 = vsel %vm443, %v381, 0
        %vm456 = vcmask 1040384
        %vm457 = vcmask 1041408
        %v458 = vsel %vm456, 4294967295, 65535
        %v459 = vsel %vm457, %v458, 0
        %v461 = vand.u32 %v433, %v459
        %463 = vmatprep.subr.bf16.mxu0 0
        %464 = vmatpush1.bf16.msra.mxu0 %v424
        %465 = vmatprep.subr.bf16.mxu0 0
        %466 = vmatpush1.bf16.msra.mxu0 %v425
        %467 = vmatprep.subr.bf16.mxu0 0
        %468 = vmatpush1.bf16.msra.mxu0 %v426
        %469 = vmatprep.subr.bf16.mxu0 0
        %470 = vmatpush1.bf16.msra.mxu0 %v427
        %471 = vmatprep.subr.bf16.mxu0 0
        %472 = vmatpush1.bf16.msra.mxu0 %v428
        %473 = vmatprep.subr.bf16.mxu0 0
        %474 = vmatpush1.bf16.msra.mxu0 %v429
        %475 = vmatprep.subr.bf16.mxu0 0
        %476 = vmatpush1.bf16.msra.mxu0 %v430
        %477 = vmatprep.subr.bf16.mxu0 0
        %478 = vmatpush1.bf16.msra.mxu0 %v431
        %479 = vmatprep.subr.bf16.mxu0 0
        %480 = vmatpush1.bf16.msra.mxu0 %v432
        %481 = vmatprep.subr.bf16.mxu0 0
        %482 = vmatpush1.bf16.msra.mxu0 %v461
        %483 = vmatprep.subr.bf16.mxu0 0
        %484 = vmatpush1.bf16.msra.mxu0 0
        %485 = vmatprep.subr.bf16.mxu0 0
        %486 = vmatpush1.bf16.msra.mxu0 0
        %487 = vmatprep.subr.bf16.mxu0 0
        %488 = vmatpush1.bf16.msra.mxu0 0
        %489 = vmatprep.subr.bf16.mxu0 0
        %490 = vmatpush1.bf16.msra.mxu0 0
        %491 = vmatprep.subr.bf16.mxu0 0
        %492 = vmatpush1.bf16.msra.mxu0 0
        %493 = vmatprep.subr.bf16.mxu0 0
        %494 = vmatpush1.bf16.msra.mxu0 0
        %495 = vmatprep.mubr.bf16.mxu0 %v445
        %496 = vmatmul.mubr.bf16.gmra.mrb[0].mxu0 %v374
        %v497 = vpop.f32.mrb[0].mxu0
        %v498 = vadd.f32 0.0, %v497
        %v499 = vpop.f32.mrb[0].mxu0
        %v500 = vpop.f32.mrb[0].mxu0
        %v501 = vadd.f32 0.0, %v500
        %v502 = vpop.f32.mrb[0].mxu0
        %503 = vmatprep.mubr.bf16.mxu0 %v448
        %504 = vmatmul.mubr.bf16.gmra.mrb[0].mxu0 %v376
        %v505 = vpop.f32.mrb[0].mxu0
        %v506 = vadd.f32 0.0, %v505
        %v507 = vpop.f32.mrb[0].mxu0
        %v508 = vpop.f32.mrb[0].mxu0
        %v509 = vadd.f32 0.0, %v508
        %v510 = vpop.f32.mrb[0].mxu0
        %511 = vmatprep.mubr.bf16.mxu0 %v451
        %512 = vmatmul.mubr.bf16.gmra.mrb[0].mxu0 %v378
        %v513 = vpop.f32.mrb[0].mxu0
        %v514 = vadd.f32 0.0, %v513
        %v515 = vpop.f32.mrb[0].mxu0
        %v516 = vpop.f32.mrb[0].mxu0
        %v517 = vadd.f32 0.0, %v516
        %v518 = vpop.f32.mrb[0].mxu0
        %519 = vmatprep.mubr.bf16.mxu0 %v454
        %520 = vmatmul.mubr.bf16.gmra.mrb[0].mxu0 %v380
        %v521 = vpop.f32.mrb[0].mxu0
        %v522 = vadd.f32 0.0, %v521
        %v523 = vpop.f32.mrb[0].mxu0
        %v524 = vpop.f32.mrb[0].mxu0
        %v525 = vadd.f32 0.0, %v524
        %v526 = vpop.f32.mrb[0].mxu0
        %527 = vdwg.mxu0
        %v528 = vld [vmem:[%s2] sm:$0x1]
        %v530 = vlaneseq
        %v531 = vshrl.u32 %v530, 7
        %v532 = vsub.s32 0, %v531
        %v533 = vrot.slane %v528, %v532
        %v535 = vmul.f32 %v498, %v533
        %v536 = vmul.f32 %v501, %v533
        %v537 = vmul.f32 %v506, %v533
        %v538 = vmul.f32 %v509, %v533
        %v539 = vmul.f32 %v514, %v533
        %v540 = vmul.f32 %v517, %v533
        %v541 = vmul.f32 %v522, %v533
        %v542 = vmul.f32 %v525, %v533
        %v543 = vld [vmem:[%s3] sm:$0x1]
        %v545 = vlaneseq
        %v546 = vshrl.u32 %v545, 7
        %v547 = vsub.s32 0, %v546
        %v548 = vrot.slane %v543, %v547
        %v550 = vadd.f32 %v535, %v548
        %v551 = vadd.f32 %v536, %v548
        %v552 = vadd.f32 %v537, %v548
        %v553 = vadd.f32 %v538, %v548
        %v554 = vadd.f32 %v539, %v548
        %v555 = vadd.f32 %v540, %v548
        %v556 = vadd.f32 %v541, %v548
        %v557 = vadd.f32 %v542, %v548
        %v558 = vmax.f32 %v550, 0.0
        %v559 = vmax.f32 %v551, 0.0
        %v560 = vmax.f32 %v552, 0.0
        %v561 = vmax.f32 %v553, 0.0
        %v562 = vmax.f32 %v554, 0.0
        %v563 = vmax.f32 %v555, 0.0
        %v564 = vmax.f32 %v556, 0.0
        %v565 = vmax.f32 %v557, 0.0
        %v566 = vld [vmem:[#allocation2] sm:$0x1]
        %v567 = vadd.f32 %v558, %v559
        %v568 = vadd.f32 %v567, %v560
        %v569 = vadd.f32 %v568, %v561
        %v570 = vadd.f32 %v569, %v562
        %v571 = vadd.f32 %v570, %v563
        %v572 = vadd.f32 %v571, %v564
        %v573 = vadd.f32 %v572, %v565
        %v574 = vrot.slane %v573, 4
        %v575 = vadd.f32 %v573, %v574
        %v576 = vrot.slane %v575, 2
        %v577 = vadd.f32 %v575, %v576
        %v578 = vrot.slane %v577, 1
        %v579 = vadd.f32 %v577, %v578
        %v580 = vadd.f32 %v566, %v579
        %581 = vst [vmem:[#allocation2] sm:$0x1] %v580
        // Predicated region
        $region61: #{tpu_custom_call.1} parent=43 // pred_check
          %p582 = pneg %p318
        $region62: #{tpu_custom_call.1} parent=43 // pred_check_branch
          %584 = sbr.rel (%p582) target = $region64
        $region63: #{tpu_custom_call.1} parent=43 // pred_region
          %v585 = vld [vmem:[#allocation2] sm:$0x1]
          %v586 = vmul.f32 %v585, 0.015625
          %v587 = vld [vmem:[#allocation8] sm:$0xff]
          %v588 = vld [vmem:[#allocation8 + $0x8] sm:$0xff]
          %v589 = vld [vmem:[#allocation8 + $0x10] sm:$0xff]
          %v590 = vld [vmem:[#allocation8 + $0x18] sm:$0xff]
          %v591 = vld [vmem:[#allocation8 + $0x20] sm:$0xff]
          %v592 = vld [vmem:[#allocation8 + $0x28] sm:$0xff]
          %v593 = vld [vmem:[#allocation8 + $0x30] sm:$0xff]
          %v594 = vld [vmem:[#allocation8 + $0x38] sm:$0xff]
          %v595 = vld [vmem:[#allocation8 + $0x40] sm:$0xff]
          %v596 = vld [vmem:[#allocation8 + $0x48] sm:$0xff]
          %v597 = vld [vmem:[#allocation8 + $0x50] sm:$0xff]
          %v598 = vld [vmem:[#allocation8 + $0x58] sm:$0xff]
          %v599 = vld [vmem:[#allocation8 + $0x60] sm:$0xff]
          %v600 = vld [vmem:[#allocation8 + $0x68] sm:$0xff]
          %v601 = vld [vmem:[#allocation8 + $0x70] sm:$0xff]
          %v602 = vld [vmem:[#allocation8 + $0x78] sm:$0xff]
          %v603 = vld [vmem:[%s5] sm:$0x1]
          %604 = vmatprep.subr.mxu0 0.0
          %v605 = vand.u32 %v587, 4294901760
          %606 = vmatpush1.msra.mxu0 %v605
          %607 = vmatprep.subr.mxu0 0.0
          %v608 = vand.u32 %v588, 4294901760
          %609 = vmatpush1.msra.mxu0 %v608
          %610 = vmatprep.subr.mxu0 0.0
          %v611 = vand.u32 %v589, 4294901760
          %612 = vmatpush1.msra.mxu0 %v611
          %613 = vmatprep.subr.mxu0 0.0
          %v614 = vand.u32 %v590, 4294901760
          %615 = vmatpush1.msra.mxu0 %v614
          %616 = vmatprep.subr.mxu0 0.0
          %v617 = vand.u32 %v591, 4294901760
          %618 = vmatpush1.msra.mxu0 %v617
          %619 = vmatprep.subr.mxu0 0.0
          %v620 = vand.u32 %v592, 4294901760
          %621 = vmatpush1.msra.mxu0 %v620
          %622 = vmatprep.subr.mxu0 0.0
          %v623 = vand.u32 %v593, 4294901760
          %624 = vmatpush1.msra.mxu0 %v623
          %625 = vmatprep.subr.mxu0 0.0
          %v626 = vand.u32 %v594, 4294901760
          %627 = vmatpush1.msra.mxu0 %v626
          %628 = vmatprep.subr.mxu0 0.0
          %v629 = vand.u32 %v595, 4294901760
          %630 = vmatpush1.msra.mxu0 %v629
          %631 = vmatprep.subr.mxu0 0.0
          %v632 = vand.u32 %v596, 4294901760
          %633 = vmatpush1.msra.mxu0 %v632
          %634 = vmatprep.subr.mxu0 0.0
          %v635 = vand.u32 %v597, 4294901760
          %636 = vmatpush1.msra.mxu0 %v635
          %637 = vmatprep.subr.mxu0 0.0
          %v638 = vand.u32 %v598, 4294901760
          %639 = vmatpush1.msra.mxu0 %v638
          %640 = vmatprep.subr.mxu0 0.0
          %v641 = vand.u32 %v599, 4294901760
          %642 = vmatpush1.msra.mxu0 %v641
          %643 = vmatprep.subr.mxu0 0.0
          %v644 = vand.u32 %v600, 4294901760
          %645 = vmatpush1.msra.mxu0 %v644
          %646 = vmatprep.subr.mxu0 0.0
          %v647 = vand.u32 %v601, 4294901760
          %648 = vmatpush1.msra.mxu0 %v647
          %649 = vmatprep.subr.mxu0 0.0
          %v650 = vand.u32 %v602, 4294901760
          %651 = vmatpush1.msra.mxu0 %v650
          %652 = vmatprep.subr.mxu0 0.0
          %653 = vmatpush1.msra.mxu0 0.0
          %654 = vmatprep.subr.mxu0 0.0
          %655 = vmatpush1.msra.mxu0 0.0
          %656 = vmatprep.subr.mxu0 0.0
          %657 = vmatpush1.msra.mxu0 0.0
          %658 = vmatprep.subr.mxu0 0.0
          %659 = vmatpush1.msra.mxu0 0.0
          %660 = vmatprep.subr.mxu0 0.0
          %661 = vmatpush1.msra.mxu0 0.0
          %662 = vmatprep.subr.mxu0 0.0
          %663 = vmatpush1.msra.mxu0 0.0
          %664 = vmatprep.subr.mxu0 0.0
          %665 = vmatpush1.msra.mxu0 0.0
          %666 = vmatprep.subr.mxu0 0.0
          %667 = vmatpush1.msra.mxu0 0.0
          %668 = vmatprep.subr.mxu0 0.0
          %669 = vmatpush1.msra.mxu0 0.0
          %670 = vmatprep.subr.mxu0 0.0
          %671 = vmatpush1.msra.mxu0 0.0
          %672 = vmatprep.subr.mxu0 0.0
          %673 = vmatpush1.msra.mxu0 0.0
          %674 = vmatprep.subr.mxu0 0.0
          %675 = vmatpush1.msra.mxu0 0.0
          %676 = vmatprep.subr.mxu0 0.0
          %677 = vmatpush1.msra.mxu0 0.0
          %678 = vmatprep.subr.mxu0 0.0
          %679 = vmatpush1.msra.mxu0 0.0
          %680 = vmatprep.subr.mxu0 0.0
          %681 = vmatpush1.msra.mxu0 0.0
          %682 = vmatprep.subr.mxu0 0.0
          %683 = vmatpush1.msra.mxu0 0.0
          %684 = vmatprep.mubr.f32.mxu0 0.0
          %v685 = vand.u32 %v586, 4294901760
          %v686 = vsub.f32 %v586, %v685
          %v687 = vand.u32 %v686, 4294901760
          %v688 = vsub.f32 %v686, %v687
          %v689 = vand.u32 %v688, 4294901760
          %690 = vmatmul.mubr.f32.gmra.mrb[0].mxu0 %v689
          %v691 = vpop.f32.mrb[0].mxu0
          %v692 = vadd.f32 %v603, %v691
          %v693 = vpop.f32.mrb[0].mxu0
          %694 = vdwg.mxu0
          %695 = vmatprep.subr.mxu0 0.0
          %v696 = vand.u32 %v587, 4294901760
          %v697 = vsub.f32 %v587, %v696
          %v698 = vand.u32 %v697, 4294901760
          %v699 = vsub.f32 %v697, %v698
          %v700 = vand.u32 %v699, 4294901760
          %701 = vmatpush1.msra.mxu0 %v700
          %702 = vmatprep.subr.mxu0 0.0
          %v703 = vand.u32 %v588, 4294901760
          %v704 = vsub.f32 %v588, %v703
          %v705 = vand.u32 %v704, 4294901760
          %v706 = vsub.f32 %v704, %v705
          %v707 = vand.u32 %v706, 4294901760
          %708 = vmatpush1.msra.mxu0 %v707
          %709 = vmatprep.subr.mxu0 0.0
          %v710 = vand.u32 %v589, 4294901760
          %v711 = vsub.f32 %v589, %v710
          %v712 = vand.u32 %v711, 4294901760
          %v713 = vsub.f32 %v711, %v712
          %v714 = vand.u32 %v713, 4294901760
          %715 = vmatpush1.msra.mxu0 %v714
          %716 = vmatprep.subr.mxu0 0.0
          %v717 = vand.u32 %v590, 4294901760
          %v718 = vsub.f32 %v590, %v717
          %v719 = vand.u32 %v718, 4294901760
          %v720 = vsub.f32 %v718, %v719
          %v721 = vand.u32 %v720, 4294901760
          %722 = vmatpush1.msra.mxu0 %v721
          %723 = vmatprep.subr.mxu0 0.0
          %v724 = vand.u32 %v591, 4294901760
          %v725 = vsub.f32 %v591, %v724
          %v726 = vand.u32 %v725, 4294901760
          %v727 = vsub.f32 %v725, %v726
          %v728 = vand.u32 %v727, 4294901760
          %729 = vmatpush1.msra.mxu0 %v728
          %730 = vmatprep.subr.mxu0 0.0
          %v731 = vand.u32 %v592, 4294901760
          %v732 = vsub.f32 %v592, %v731
          %v733 = vand.u32 %v732, 4294901760
          %v734 = vsub.f32 %v732, %v733
          %v735 = vand.u32 %v734, 4294901760
          %736 = vmatpush1.msra.mxu0 %v735
          %737 = vmatprep.subr.mxu0 0.0
          %v738 = vand.u32 %v593, 4294901760
          %v739 = vsub.f32 %v593, %v738
          %v740 = vand.u32 %v739, 4294901760
          %v741 = vsub.f32 %v739, %v740
          %v742 = vand.u32 %v741, 4294901760
          %743 = vmatpush1.msra.mxu0 %v742
          %744 = vmatprep.subr.mxu0 0.0
          %v745 = vand.u32 %v594, 4294901760
          %v746 = vsub.f32 %v594, %v745
          %v747 = vand.u32 %v746, 4294901760
          %v748 = vsub.f32 %v746, %v747
          %v749 = vand.u32 %v748, 4294901760
          %750 = vmatpush1.msra.mxu0 %v749
          %751 = vmatprep.subr.mxu0 0.0
          %v752 = vand.u32 %v595, 4294901760
          %v753 = vsub.f32 %v595, %v752
          %v754 = vand.u32 %v753, 4294901760
          %v755 = vsub.f32 %v753, %v754
          %v756 = vand.u32 %v755, 4294901760
          %757 = vmatpush1.msra.mxu0 %v756
          %758 = vmatprep.subr.mxu0 0.0
          %v759 = vand.u32 %v596, 4294901760
          %v760 = vsub.f32 %v596, %v759
          %v761 = vand.u32 %v760, 4294901760
          %v762 = vsub.f32 %v760, %v761
          %v763 = vand.u32 %v762, 4294901760
          %764 = vmatpush1.msra.mxu0 %v763
          %765 = vmatprep.subr.mxu0 0.0
          %v766 = vand.u32 %v597, 4294901760
          %v767 = vsub.f32 %v597, %v766
          %v768 = vand.u32 %v767, 4294901760
          %v769 = vsub.f32 %v767, %v768
          %v770 = vand.u32 %v769, 4294901760
          %771 = vmatpush1.msra.mxu0 %v770
          %772 = vmatprep.subr.mxu0 0.0
          %v773 = vand.u32 %v598, 4294901760
          %v774 = vsub.f32 %v598, %v773
          %v775 = vand.u32 %v774, 4294901760
          %v776 = vsub.f32 %v774, %v775
          %v777 = vand.u32 %v776, 4294901760
          %778 = vmatpush1.msra.mxu0 %v777
          %779 = vmatprep.subr.mxu0 0.0
          %v780 = vand.u32 %v599, 4294901760
          %v781 = vsub.f32 %v599, %v780
          %v782 = vand.u32 %v781, 4294901760
          %v783 = vsub.f32 %v781, %v782
          %v784 = vand.u32 %v783, 4294901760
          %785 = vmatpush1.msra.mxu0 %v784
          %786 = vmatprep.subr.mxu0 0.0
          %v787 = vand.u32 %v600, 4294901760
          %v788 = vsub.f32 %v600, %v787
          %v789 = vand.u32 %v788, 4294901760
          %v790 = vsub.f32 %v788, %v789
          %v791 = vand.u32 %v790, 4294901760
          %792 = vmatpush1.msra.mxu0 %v791
          %793 = vmatprep.subr.mxu0 0.0
          %v794 = vand.u32 %v601, 4294901760
          %v795 = vsub.f32 %v601, %v794
          %v796 = vand.u32 %v795, 4294901760
          %v797 = vsub.f32 %v795, %v796
          %v798 = vand.u32 %v797, 4294901760
          %799 = vmatpush1.msra.mxu0 %v798
          %800 = vmatprep.subr.mxu0 0.0
          %v801 = vand.u32 %v602, 4294901760
          %v802 = vsub.f32 %v602, %v801
          %v803 = vand.u32 %v802, 4294901760
          %v804 = vsub.f32 %v802, %v803
          %v805 = vand.u32 %v804, 4294901760
          %806 = vmatpush1.msra.mxu0 %v805
          %807 = vmatprep.subr.mxu0 0.0
          %808 = vmatpush1.msra.mxu0 0.0
          %809 = vmatprep.subr.mxu0 0.0
          %810 = vmatpush1.msra.mxu0 0.0
          %811 = vmatprep.subr.mxu0 0.0
          %812 = vmatpush1.msra.mxu0 0.0
          %813 = vmatprep.subr.mxu0 0.0
          %814 = vmatpush1.msra.mxu0 0.0
          %815 = vmatprep.subr.mxu0 0.0
          %816 = vmatpush1.msra.mxu0 0.0
          %817 = vmatprep.subr.mxu0 0.0
          %818 = vmatpush1.msra.mxu0 0.0
          %819 = vmatprep.subr.mxu0 0.0
          %820 = vmatpush1.msra.mxu0 0.0
          %821 = vmatprep.subr.mxu0 0.0
          %822 = vmatpush1.msra.mxu0 0.0
          %823 = vmatprep.subr.mxu0 0.0
          %824 = vmatpush1.msra.mxu0 0.0
          %825 = vmatprep.subr.mxu0 0.0
          %826 = vmatpush1.msra.mxu0 0.0
          %827 = vmatprep.subr.mxu0 0.0
          %828 = vmatpush1.msra.mxu0 0.0
          %829 = vmatprep.subr.mxu0 0.0
          %830 = vmatpush1.msra.mxu0 0.0
          %831 = vmatprep.subr.mxu0 0.0
          %832 = vmatpush1.msra.mxu0 0.0
          %833 = vmatprep.subr.mxu0 0.0
          %834 = vmatpush1.msra.mxu0 0.0
          %835 = vmatprep.subr.mxu0 0.0
          %836 = vmatpush1.msra.mxu0 0.0
          %837 = vmatprep.subr.mxu0 0.0
          %838 = vmatpush1.msra.mxu0 0.0
          %839 = vmatprep.mubr.f32.mxu0 0.0
          %v840 = vand.u32 %v586, 4294901760
          %841 = vmatmul.mubr.f32.gmra.mrb[0].mxu0 %v840
          %v842 = vpop.f32.mrb[0].mxu0
          %v843 = vadd.f32 %v692, %v842
          %v844 = vpop.f32.mrb[0].mxu0
          %845 = vdwg.mxu0
          %846 = vmatprep.subr.mxu0 0.0
          %v847 = vand.u32 %v587, 4294901760
          %v848 = vsub.f32 %v587, %v847
          %849 = vmatpush1.msra.mxu0 %v848
          %850 = vmatprep.subr.mxu0 0.0
          %v851 = vand.u32 %v588, 4294901760
          %v852 = vsub.f32 %v588, %v851
          %853 = vmatpush1.msra.mxu0 %v852
          %854 = vmatprep.subr.mxu0 0.0
          %v855 = vand.u32 %v589, 4294901760
          %v856 = vsub.f32 %v589, %v855
          %857 = vmatpush1.msra.mxu0 %v856
          %858 = vmatprep.subr.mxu0 0.0
          %v859 = vand.u32 %v590, 4294901760
          %v860 = vsub.f32 %v590, %v859
          %861 = vmatpush1.msra.mxu0 %v860
          %862 = vmatprep.subr.mxu0 0.0
          %v863 = vand.u32 %v591, 4294901760
          %v864 = vsub.f32 %v591, %v863
          %865 = vmatpush1.msra.mxu0 %v864
          %866 = vmatprep.subr.mxu0 0.0
          %v867 = vand.u32 %v592, 4294901760
          %v868 = vsub.f32 %v592, %v867
          %869 = vmatpush1.msra.mxu0 %v868
          %870 = vmatprep.subr.mxu0 0.0
          %v871 = vand.u32 %v593, 4294901760
          %v872 = vsub.f32 %v593, %v871
          %873 = vmatpush1.msra.mxu0 %v872
          %874 = vmatprep.subr.mxu0 0.0
          %v875 = vand.u32 %v594, 4294901760
          %v876 = vsub.f32 %v594, %v875
          %877 = vmatpush1.msra.mxu0 %v876
          %878 = vmatprep.subr.mxu0 0.0
          %v879 = vand.u32 %v595, 4294901760
          %v880 = vsub.f32 %v595, %v879
          %881 = vmatpush1.msra.mxu0 %v880
          %882 = vmatprep.subr.mxu0 0.0
          %v883 = vand.u32 %v596, 4294901760
          %v884 = vsub.f32 %v596, %v883
          %885 = vmatpush1.msra.mxu0 %v884
          %886 = vmatprep.subr.mxu0 0.0
          %v887 = vand.u32 %v597, 4294901760
          %v888 = vsub.f32 %v597, %v887
          %889 = vmatpush1.msra.mxu0 %v888
          %890 = vmatprep.subr.mxu0 0.0
          %v891 = vand.u32 %v598, 4294901760
          %v892 = vsub.f32 %v598, %v891
          %893 = vmatpush1.msra.mxu0 %v892
          %894 = vmatprep.subr.mxu0 0.0
          %v895 = vand.u32 %v599, 4294901760
          %v896 = vsub.f32 %v599, %v895
          %897 = vmatpush1.msra.mxu0 %v896
          %898 = vmatprep.subr.mxu0 0.0
          %v899 = vand.u32 %v600, 4294901760
          %v900 = vsub.f32 %v600, %v899
          %901 = vmatpush1.msra.mxu0 %v900
          %902 = vmatprep.subr.mxu0 0.0
          %v903 = vand.u32 %v601, 4294901760
          %v904 = vsub.f32 %v601, %v903
          %905 = vmatpush1.msra.mxu0 %v904
          %906 = vmatprep.subr.mxu0 0.0
          %v907 = vand.u32 %v602, 4294901760
          %v908 = vsub.f32 %v602, %v907
          %909 = vmatpush1.msra.mxu0 %v908
          %910 = vmatprep.subr.mxu0 0.0
          %911 = vmatpush1.msra.mxu0 0.0
          %912 = vmatprep.subr.mxu0 0.0
          %913 = vmatpush1.msra.mxu0 0.0
          %914 = vmatprep.subr.mxu0 0.0
          %915 = vmatpush1.msra.mxu0 0.0
          %916 = vmatprep.subr.mxu0 0.0
          %917 = vmatpush1.msra.mxu0 0.0
          %918 = vmatprep.subr.mxu0 0.0
          %919 = vmatpush1.msra.mxu0 0.0
          %920 = vmatprep.subr.mxu0 0.0
          %921 = vmatpush1.msra.mxu0 0.0
          %922 = vmatprep.subr.mxu0 0.0
          %923 = vmatpush1.msra.mxu0 0.0
          %924 = vmatprep.subr.mxu0 0.0
          %925 = vmatpush1.msra.mxu0 0.0
          %926 = vmatprep.subr.mxu0 0.0
          %927 = vmatpush1.msra.mxu0 0.0
          %928 = vmatprep.subr.mxu0 0.0
          %929 = vmatpush1.msra.mxu0 0.0
          %930 = vmatprep.subr.mxu0 0.0
          %931 = vmatpush1.msra.mxu0 0.0
          %932 = vmatprep.subr.mxu0 0.0
          %933 = vmatpush1.msra.mxu0 0.0
          %934 = vmatprep.subr.mxu0 0.0
          %935 = vmatpush1.msra.mxu0 0.0
          %936 = vmatprep.subr.mxu0 0.0
          %937 = vmatpush1.msra.mxu0 0.0
          %938 = vmatprep.subr.mxu0 0.0
          %939 = vmatpush1.msra.mxu0 0.0
          %940 = vmatprep.subr.mxu0 0.0
          %941 = vmatpush1.msra.mxu0 0.0
          %942 = vmatprep.mubr.f32.mxu0 0.0
          %v943 = vand.u32 %v586, 4294901760
          %v944 = vsub.f32 %v586, %v943
          %945 = vmatmul.mubr.f32.gmra.mrb[0].mxu0 %v944
          %v946 = vpop.f32.mrb[0].mxu0
          %v947 = vadd.f32 %v843, %v946
          %v948 = vpop.f32.mrb[0].mxu0
          %949 = vdwg.mxu0
          %950 = vmatprep.subr.mxu0 0.0
          %v951 = vand.u32 %v587, 4294901760
          %952 = vmatpush1.msra.mxu0 %v951
          %953 = vmatprep.subr.mxu0 0.0
          %v954 = vand.u32 %v588, 4294901760
          %955 = vmatpush1.msra.mxu0 %v954
          %956 = vmatprep.subr.mxu0 0.0
          %v957 = vand.u32 %v589, 4294901760
          %958 = vmatpush1.msra.mxu0 %v957
          %959 = vmatprep.subr.mxu0 0.0
          %v960 = vand.u32 %v590, 4294901760
          %961 = vmatpush1.msra.mxu0 %v960
          %962 = vmatprep.subr.mxu0 0.0
          %v963 = vand.u32 %v591, 4294901760
          %964 = vmatpush1.msra.mxu0 %v963
          %965 = vmatprep.subr.mxu0 0.0
          %v966 = vand.u32 %v592, 4294901760
          %967 = vmatpush1.msra.mxu0 %v966
          %968 = vmatprep.subr.mxu0 0.0
          %v969 = vand.u32 %v593, 4294901760
          %970 = vmatpush1.msra.mxu0 %v969
          %971 = vmatprep.subr.mxu0 0.0
          %v972 = vand.u32 %v594, 4294901760
          %973 = vmatpush1.msra.mxu0 %v972
          %974 = vmatprep.subr.mxu0 0.0
          %v975 = vand.u32 %v595, 4294901760
          %976 = vmatpush1.msra.mxu0 %v975
          %977 = vmatprep.subr.mxu0 0.0
          %v978 = vand.u32 %v596, 4294901760
          %979 = vmatpush1.msra.mxu0 %v978
          %980 = vmatprep.subr.mxu0 0.0
          %v981 = vand.u32 %v597, 4294901760
          %982 = vmatpush1.msra.mxu0 %v981
          %983 = vmatprep.subr.mxu0 0.0
          %v984 = vand.u32 %v598, 4294901760
          %985 = vmatpush1.msra.mxu0 %v984
          %986 = vmatprep.subr.mxu0 0.0
          %v987 = vand.u32 %v599, 4294901760
          %988 = vmatpush1.msra.mxu0 %v987
          %989 = vmatprep.subr.mxu0 0.0
          %v990 = vand.u32 %v600, 4294901760
          %991 = vmatpush1.msra.mxu0 %v990
          %992 = vmatprep.subr.mxu0 0.0
          %v993 = vand.u32 %v601, 4294901760
          %994 = vmatpush1.msra.mxu0 %v993
          %995 = vmatprep.subr.mxu0 0.0
          %v996 = vand.u32 %v602, 4294901760
          %997 = vmatpush1.msra.mxu0 %v996
          %998 = vmatprep.subr.mxu0 0.0
          %999 = vmatpush1.msra.mxu0 0.0
          %1000 = vmatprep.subr.mxu0 0.0
          %1001 = vmatpush1.msra.mxu0 0.0
          %1002 = vmatprep.subr.mxu0 0.0
          %1003 = vmatpush1.msra.mxu0 0.0
          %1004 = vmatprep.subr.mxu0 0.0
          %1005 = vmatpush1.msra.mxu0 0.0
          %1006 = vmatprep.subr.mxu0 0.0
          %1007 = vmatpush1.msra.mxu0 0.0
          %1008 = vmatprep.subr.mxu0 0.0
          %1009 = vmatpush1.msra.mxu0 0.0
          %1010 = vmatprep.subr.mxu0 0.0
          %1011 = vmatpush1.msra.mxu0 0.0
          %1012 = vmatprep.subr.mxu0 0.0
          %1013 = vmatpush1.msra.mxu0 0.0
          %1014 = vmatprep.subr.mxu0 0.0
          %1015 = vmatpush1.msra.mxu0 0.0
          %1016 = vmatprep.subr.mxu0 0.0
          %1017 = vmatpush1.msra.mxu0 0.0
          %1018 = vmatprep.subr.mxu0 0.0
          %1019 = vmatpush1.msra.mxu0 0.0
          %1020 = vmatprep.subr.mxu0 0.0
          %1021 = vmatpush1.msra.mxu0 0.0
          %1022 = vmatprep.subr.mxu0 0.0
          %1023 = vmatpush1.msra.mxu0 0.0
          %1024 = vmatprep.subr.mxu0 0.0
          %1025 = vmatpush1.msra.mxu0 0.0
          %1026 = vmatprep.subr.mxu0 0.0
          %1027 = vmatpush1.msra.mxu0 0.0
          %1028 = vmatprep.subr.mxu0 0.0
          %1029 = vmatpush1.msra.mxu0 0.0
          %1030 = vmatprep.mubr.f32.mxu0 0.0
          %v1031 = vand.u32 %v586, 4294901760
          %v1032 = vsub.f32 %v586, %v1031
          %v1033 = vand.u32 %v1032, 4294901760
          %1034 = vmatmul.mubr.f32.gmra.mrb[0].mxu0 %v1033
          %v1035 = vpop.f32.mrb[0].mxu0
          %v1036 = vadd.f32 %v947, %v1035
          %v1037 = vpop.f32.mrb[0].mxu0
          %1038 = vdwg.mxu0
          %1039 = vmatprep.subr.mxu0 0.0
          %v1040 = vand.u32 %v587, 4294901760
          %v1041 = vsub.f32 %v587, %v1040
          %v1042 = vand.u32 %v1041, 4294901760
          %1043 = vmatpush1.msra.mxu0 %v1042
          %1044 = vmatprep.subr.mxu0 0.0
          %v1045 = vand.u32 %v588, 4294901760
          %v1046 = vsub.f32 %v588, %v1045
          %v1047 = vand.u32 %v1046, 4294901760
          %1048 = vmatpush1.msra.mxu0 %v1047
          %1049 = vmatprep.subr.mxu0 0.0
          %v1050 = vand.u32 %v589, 4294901760
          %v1051 = vsub.f32 %v589, %v1050
          %v1052 = vand.u32 %v1051, 4294901760
          %1053 = vmatpush1.msra.mxu0 %v1052
          %1054 = vmatprep.subr.mxu0 0.0
          %v1055 = vand.u32 %v590, 4294901760
          %v1056 = vsub.f32 %v590, %v1055
          %v1057 = vand.u32 %v1056, 4294901760
          %1058 = vmatpush1.msra.mxu0 %v1057
          %1059 = vmatprep.subr.mxu0 0.0
          %v1060 = vand.u32 %v591, 4294901760
          %v1061 = vsub.f32 %v591, %v1060
          %v1062 = vand.u32 %v1061, 4294901760
          %1063 = vmatpush1.msra.mxu0 %v1062
          %1064 = vmatprep.subr.mxu0 0.0
          %v1065 = vand.u32 %v592, 4294901760
          %v1066 = vsub.f32 %v592, %v1065
          %v1067 = vand.u32 %v1066, 4294901760
          %1068 = vmatpush1.msra.mxu0 %v1067
          %1069 = vmatprep.subr.mxu0 0.0
          %v1070 = vand.u32 %v593, 4294901760
          %v1071 = vsub.f32 %v593, %v1070
          %v1072 = vand.u32 %v1071, 4294901760
          %1073 = vmatpush1.msra.mxu0 %v1072
          %1074 = vmatprep.subr.mxu0 0.0
          %v1075 = vand.u32 %v594, 4294901760
          %v1076 = vsub.f32 %v594, %v1075
          %v1077 = vand.u32 %v1076, 4294901760
          %1078 = vmatpush1.msra.mxu0 %v1077
          %1079 = vmatprep.subr.mxu0 0.0
          %v1080 = vand.u32 %v595, 4294901760
          %v1081 = vsub.f32 %v595, %v1080
          %v1082 = vand.u32 %v1081, 4294901760
          %1083 = vmatpush1.msra.mxu0 %v1082
          %1084 = vmatprep.subr.mxu0 0.0
          %v1085 = vand.u32 %v596, 4294901760
          %v1086 = vsub.f32 %v596, %v1085
          %v1087 = vand.u32 %v1086, 4294901760
          %1088 = vmatpush1.msra.mxu0 %v1087
          %1089 = vmatprep.subr.mxu0 0.0
          %v1090 = vand.u32 %v597, 4294901760
          %v1091 = vsub.f32 %v597, %v1090
          %v1092 = vand.u32 %v1091, 4294901760
          %1093 = vmatpush1.msra.mxu0 %v1092
          %1094 = vmatprep.subr.mxu0 0.0
          %v1095 = vand.u32 %v598, 4294901760
          %v1096 = vsub.f32 %v598, %v1095
          %v1097 = vand.u32 %v1096, 4294901760
          %1098 = vmatpush1.msra.mxu0 %v1097
          %1099 = vmatprep.subr.mxu0 0.0
          %v1100 = vand.u32 %v599, 4294901760
          %v1101 = vsub.f32 %v599, %v1100
          %v1102 = vand.u32 %v1101, 4294901760
          %1103 = vmatpush1.msra.mxu0 %v1102
          %1104 = vmatprep.subr.mxu0 0.0
          %v1105 = vand.u32 %v600, 4294901760
          %v1106 = vsub.f32 %v600, %v1105
          %v1107 = vand.u32 %v1106, 4294901760
          %1108 = vmatpush1.msra.mxu0 %v1107
          %1109 = vmatprep.subr.mxu0 0.0
          %v1110 = vand.u32 %v601, 4294901760
          %v1111 = vsub.f32 %v601, %v1110
          %v1112 = vand.u32 %v1111, 4294901760
          %1113 = vmatpush1.msra.mxu0 %v1112
          %1114 = vmatprep.subr.mxu0 0.0
          %v1115 = vand.u32 %v602, 4294901760
          %v1116 = vsub.f32 %v602, %v1115
          %v1117 = vand.u32 %v1116, 4294901760
          %1118 = vmatpush1.msra.mxu0 %v1117
          %1119 = vmatprep.subr.mxu0 0.0
          %1120 = vmatpush1.msra.mxu0 0.0
          %1121 = vmatprep.subr.mxu0 0.0
          %1122 = vmatpush1.msra.mxu0 0.0
          %1123 = vmatprep.subr.mxu0 0.0
          %1124 = vmatpush1.msra.mxu0 0.0
          %1125 = vmatprep.subr.mxu0 0.0
          %1126 = vmatpush1.msra.mxu0 0.0
          %1127 = vmatprep.subr.mxu0 0.0
          %1128 = vmatpush1.msra.mxu0 0.0
          %1129 = vmatprep.subr.mxu0 0.0
          %1130 = vmatpush1.msra.mxu0 0.0
          %1131 = vmatprep.subr.mxu0 0.0
          %1132 = vmatpush1.msra.mxu0 0.0
          %1133 = vmatprep.subr.mxu0 0.0
          %1134 = vmatpush1.msra.mxu0 0.0
          %1135 = vmatprep.subr.mxu0 0.0
          %1136 = vmatpush1.msra.mxu0 0.0
          %1137 = vmatprep.subr.mxu0 0.0
          %1138 = vmatpush1.msra.mxu0 0.0
          %1139 = vmatprep.subr.mxu0 0.0
          %1140 = vmatpush1.msra.mxu0 0.0
          %1141 = vmatprep.subr.mxu0 0.0
          %1142 = vmatpush1.msra.mxu0 0.0
          %1143 = vmatprep.subr.mxu0 0.0
          %1144 = vmatpush1.msra.mxu0 0.0
          %1145 = vmatprep.subr.mxu0 0.0
          %1146 = vmatpush1.msra.mxu0 0.0
          %1147 = vmatprep.subr.mxu0 0.0
          %1148 = vmatpush1.msra.mxu0 0.0
          %1149 = vmatprep.subr.mxu0 0.0
          %1150 = vmatpush1.msra.mxu0 0.0
          %1151 = vmatprep.mubr.f32.mxu0 0.0
          %v1152 = vand.u32 %v586, 4294901760
          %1153 = vmatmul.mubr.f32.gmra.mrb[0].mxu0 %v1152
          %v1154 = vpop.f32.mrb[0].mxu0
          %v1155 = vadd.f32 %v1036, %v1154
          %v1156 = vpop.f32.mrb[0].mxu0
          %1157 = vdwg.mxu0
          %1158 = vmatprep.subr.mxu0 0.0
          %v1159 = vand.u32 %v587, 4294901760
          %1160 = vmatpush1.msra.mxu0 %v1159
          %1161 = vmatprep.subr.mxu0 0.0
          %v1162 = vand.u32 %v588, 4294901760
          %1163 = vmatpush1.msra.mxu0 %v1162
          %1164 = vmatprep.subr.mxu0 0.0
          %v1165 = vand.u32 %v589, 4294901760
          %1166 = vmatpush1.msra.mxu0 %v1165
          %1167 = vmatprep.subr.mxu0 0.0
          %v1168 = vand.u32 %v590, 4294901760
          %1169 = vmatpush1.msra.mxu0 %v1168
          %1170 = vmatprep.subr.mxu0 0.0
          %v1171 = vand.u32 %v591, 4294901760
          %1172 = vmatpush1.msra.mxu0 %v1171
          %1173 = vmatprep.subr.mxu0 0.0
          %v1174 = vand.u32 %v592, 4294901760
          %1175 = vmatpush1.msra.mxu0 %v1174
          %1176 = vmatprep.subr.mxu0 0.0
          %v1177 = vand.u32 %v593, 4294901760
          %1178 = vmatpush1.msra.mxu0 %v1177
          %1179 = vmatprep.subr.mxu0 0.0
          %v1180 = vand.u32 %v594, 4294901760
          %1181 = vmatpush1.msra.mxu0 %v1180
          %1182 = vmatprep.subr.mxu0 0.0
          %v1183 = vand.u32 %v595, 4294901760
          %1184 = vmatpush1.msra.mxu0 %v1183
          %1185 = vmatprep.subr.mxu0 0.0
          %v1186 = vand.u32 %v596, 4294901760
          %1187 = vmatpush1.msra.mxu0 %v1186
          %1188 = vmatprep.subr.mxu0 0.0
          %v1189 = vand.u32 %v597, 4294901760
          %1190 = vmatpush1.msra.mxu0 %v1189
          %1191 = vmatprep.subr.mxu0 0.0
          %v1192 = vand.u32 %v598, 4294901760
          %1193 = vmatpush1.msra.mxu0 %v1192
          %1194 = vmatprep.subr.mxu0 0.0
          %v1195 = vand.u32 %v599, 4294901760
          %1196 = vmatpush1.msra.mxu0 %v1195
          %1197 = vmatprep.subr.mxu0 0.0
          %v1198 = vand.u32 %v600, 4294901760
          %1199 = vmatpush1.msra.mxu0 %v1198
          %1200 = vmatprep.subr.mxu0 0.0
          %v1201 = vand.u32 %v601, 4294901760
          %1202 = vmatpush1.msra.mxu0 %v1201
          %1203 = vmatprep.subr.mxu0 0.0
          %v1204 = vand.u32 %v602, 4294901760
          %1205 = vmatpush1.msra.mxu0 %v1204
          %1206 = vmatprep.subr.mxu0 0.0
          %1207 = vmatpush1.msra.mxu0 0.0
          %1208 = vmatprep.subr.mxu0 0.0
          %1209 = vmatpush1.msra.mxu0 0.0
          %1210 = vmatprep.subr.mxu0 0.0
          %1211 = vmatpush1.msra.mxu0 0.0
          %1212 = vmatprep.subr.mxu0 0.0
          %1213 = vmatpush1.msra.mxu0 0.0
          %1214 = vmatprep.subr.mxu0 0.0
          %1215 = vmatpush1.msra.mxu0 0.0
          %1216 = vmatprep.subr.mxu0 0.0
          %1217 = vmatpush1.msra.mxu0 0.0
          %1218 = vmatprep.subr.mxu0 0.0
          %1219 = vmatpush1.msra.mxu0 0.0
          %1220 = vmatprep.subr.mxu0 0.0
          %1221 = vmatpush1.msra.mxu0 0.0
          %1222 = vmatprep.subr.mxu0 0.0
          %1223 = vmatpush1.msra.mxu0 0.0
          %1224 = vmatprep.subr.mxu0 0.0
          %1225 = vmatpush1.msra.mxu0 0.0
          %1226 = vmatprep.subr.mxu0 0.0
          %1227 = vmatpush1.msra.mxu0 0.0
          %1228 = vmatprep.subr.mxu0 0.0
          %1229 = vmatpush1.msra.mxu0 0.0
          %1230 = vmatprep.subr.mxu0 0.0
          %1231 = vmatpush1.msra.mxu0 0.0
          %1232 = vmatprep.subr.mxu0 0.0
          %1233 = vmatpush1.msra.mxu0 0.0
          %1234 = vmatprep.subr.mxu0 0.0
          %1235 = vmatpush1.msra.mxu0 0.0
          %1236 = vmatprep.subr.mxu0 0.0
          %1237 = vmatpush1.msra.mxu0 0.0
          %1238 = vmatprep.mubr.f32.mxu0 0.0
          %v1239 = vand.u32 %v586, 4294901760
          %1240 = vmatmul.mubr.f32.gmra.mrb[0].mxu0 %v1239
          %v1241 = vpop.f32.mrb[0].mxu0
          %v1242 = vadd.f32 %v1155, %v1241
          %v1243 = vpop.f32.mrb[0].mxu0
          %1244 = vdwg.mxu0
          %v1245 = vlaneseq
          %v1246 = vshrl.u32 %v1245, 7
          %v1247 = vsub.s32 0, %v1246
          %v1248 = vrot.slane %v1242, %v1247
          %1249 = vst [vmem:[%s315] sm:$0xff] %v1248
        $region64: #{tpu_custom_call.1} parent=43 // pred_fallthru
          _
        %s1250 = sand.u32 %s177, 1
        %s1251 = scalar_lea.sflag [#allocation5], %s1250
        %s1252 = sand.u32 %s177, 1
        %s1253 = smul.addr %s1252, 8
        %s1254 = scalar_lea.vmem [#allocation9], %s1253
        // Predicated region
        $region65: #{tpu_custom_call.1} parent=43 // pred_check
          %p1255 = pneg %p187
        $region66: #{tpu_custom_call.1} parent=43 // pred_check_branch
          %1257 = sbr.rel (%p1255) target = $region68
        $region67: #{tpu_custom_call.1} parent=43 // pred_region
          %s1259 = ssub.s32 128, 128
          %1260 = vsyncadd %s1251, %s1259
          %s1261 = smul.addr %s28, 128
          %s1262 = scalar_lea.hbm %s6, %s1261
          %s1264 = sshll.u32 %s1254, 4
          %s1265 = int_to_ptr.vmem [resolvable:$true] %s1264
          %1267 = dma.vmem_to_hbm [thread:$0]  %s1265, 128, %s1262, %s1251
        $region68: #{tpu_custom_call.1} parent=43 // pred_fallthru
          _
      $region44: #{tpu_custom_call.1} parent=5 // pred_fallthru
        _
      %p1268 = scmp.le.s32.totalorder 2, %s19
      // Predicated region
      $region69: #{tpu_custom_call.1} parent=5 // pred_check
        %p1269 = pneg %p1268
      $region70: #{tpu_custom_call.1} parent=5 // pred_check_branch
        %1271 = sbr.rel (%p1269) target = $region72
      $region71: #{tpu_custom_call.1} parent=5 // pred_region
        %s1272 = ssub.s32 %s19, 2
        // Predicated region
        $region73: #{tpu_custom_call.1} parent=71 // pred_check
          %p1273 = pneg %p193
        $region74: #{tpu_custom_call.1} parent=71 // pred_check_branch
          %1275 = sbr.rel (%p1273) target = $region76
        $region75: #{tpu_custom_call.1} parent=71 // pred_region
          %s1276 = sand.u32 %s178, 1
          %s1277 = scalar_lea.sflag [#allocation5], %s1276
          %s1278 = sand.u32 %s178, 1
          %s1279 = smul.addr %s1278, 8
          %s1280 = scalar_lea.vmem [#allocation9], %s1279
          %1281 = dma.done %s1277, 128
        $region76: #{tpu_custom_call.1} parent=71 // pred_fallthru
          _
      $region72: #{tpu_custom_call.1} parent=5 // pred_fallthru
        _
    $region6: #{tpu_custom_call.1} parent=1 // loop_footer
      %s23 = sadd.s32 1, %s19
    $region7: #{tpu_custom_call.1} parent=1 // loop_footer_branch
      %18 = sbr.rel target = $region3
    $region8: #{tpu_custom_call.1} parent=1 // loop_exit
      _
    %1282 = vsyncpa [#allocation4], 1
    %s1283 = scalar_lea.sflag [#allocation4], 1
    %1284 = vsyncpa %s1283, 1
    %1285 = vsyncpa [#allocation7], 1
    %1286 = vsyncpa [#allocation5], 1
    %s1287 = scalar_lea.sflag [#allocation5], 1
    %1288 = vsyncpa %s1287, 1

</llo_original>
